<compile_context>
chip_gen: v6e
topology: v6e:2x2x1
jax: 0.10.0
libtpu: 0.0.40
codegen_flags: <defaults>
</compile_context>

<pallas_src>
import functools

import jax
import jax.numpy as jnp
from jax import lax
from jax.experimental import pallas as pl
from jax.experimental.pallas import tpu as pltpu


def lstm_classifier_kernel(x_ref, w_in_ref, w_rec_ref, b_ref,
                           fc_w_ref, fc_b_ref, out_ref, *, hidden_dim):
    T, B, D = x_ref.shape            # time-major input tile (T, batch_tile, D)
    H = hidden_dim
    H2 = 2 * H                       # fused fwd+bwd state width
    H8 = 8 * H                       # fused gate width (4 gates x 2 directions)

    # ---- hoisted input projection: one big matmul off the recurrent chain ----
    x_flat = x_ref[...].reshape(T * B, D)
    xw = (jnp.dot(x_flat, w_in_ref[...], preferred_element_type=jnp.float32)
          + b_ref[...])              # (T*B, 8H), bias folded in once

    w_rec = w_rec_ref[...]           # (2H, 8H) block-diagonal fused recurrent weight

    # Lane masks over the fused gate axis: gate-major [i | f | g | o], each 2H wide,
    # first H lanes of each 2H block belong to the forward direction.
    lane = lax.broadcasted_iota(jnp.int32, (B, H8), 1)
    is_fwd_lane = (lane % H2) < H
    is_g_lane = (lane >= 2 * H2) & (lane < 3 * H2)

    h = jnp.zeros((B, H2), jnp.float32)   # [h_fwd | h_bwd]
    c = jnp.zeros((B, H2), jnp.float32)   # [c_fwd | c_bwd]

    # Fully unrolled recurrence: one fused (B,2H)@(2H,8H) MXU push per time step.
    for t in range(T):
        gx_f = xw[t * B:(t + 1) * B, :]             # fwd dir consumes x[t]
        gx_b = xw[(T - 1 - t) * B:(T - t) * B, :]   # bwd dir consumes x[T-1-t]
        gx = jnp.where(is_fwd_lane, gx_f, gx_b)
        gates = gx + jnp.dot(h, w_rec, preferred_element_type=jnp.float32)
        # full-vreg EUP sigmoid/tanh + per-lane select (no narrow masked EUP ops)
        act = jnp.where(is_g_lane, jnp.tanh(gates), jax.nn.sigmoid(gates))
        i = act[:, 0:H2]
        f = act[:, H2:2 * H2]
        g = act[:, 2 * H2:3 * H2]
        o = act[:, 3 * H2:4 * H2]
        c = f * c + i * g
        h = o * jnp.tanh(c)

    # h == [last fwd hidden | last bwd hidden] == torch.cat((hn[-2], hn[-1]), dim=1)
    out = (jnp.dot(h, fc_w_ref[...], preferred_element_type=jnp.float32)
           + fc_b_ref[...])
    out_ref[...] = out.astype(out_ref.dtype)


def pack_fused_params(params, hidden_dim):
    """Pack per-direction LSTM weights into the fused gate-major layout.

    Fused 8H column layout: [i_f i_b | f_f f_b | g_f g_b | o_f o_b].
    w_rec is block-diagonal: rows 0:H (h_fwd) only feed forward gate columns,
    rows H:2H (h_bwd) only feed backward gate columns.
    """
    H = hidden_dim

    def fuse_cols(wf, wb):
        parts = []
        for g in range(4):
            parts.append(wf[..., g * H:(g + 1) * H])
            parts.append(wb[..., g * H:(g + 1) * H])
        return jnp.concatenate(parts, axis=-1)

    w_in = fuse_cols(params["w_ih_f"], params["w_ih_b"])              # (D, 8H)
    w_rec = jnp.concatenate(
        [fuse_cols(params["w_hh_f"], jnp.zeros_like(params["w_hh_b"])),
         fuse_cols(jnp.zeros_like(params["w_hh_f"]), params["w_hh_b"])],
        axis=0)                                                       # (2H, 8H)
    b = fuse_cols(params["b_f"], params["b_b"])                       # (1, 8H)
    return w_in, w_rec, b


def lstm_classifier(x, params, hidden_dim, num_classes):
    B, T, D = x.shape
    H = hidden_dim
    w_in, w_rec, b = pack_fused_params(params, H)
    fc_w, fc_b = params["fc_w"], params["fc_b"]

    x_tm = jnp.transpose(x, (1, 0, 2))        # time-major (T, B, D), layout plumbing

    # Batch-tile grid ("parallel"): shards across TensorCores (v7x) and streams
    # x tiles through VMEM for big batches; here it is a single tile.
    bt = B if B <= 128 else 128
    assert B % bt == 0, "batch must divide evenly into batch tiles"
    grid = (B // bt,)

    kernel = functools.partial(lstm_classifier_kernel, hidden_dim=H)
    return pl.pallas_call(
        kernel,
        out_shape=jax.ShapeDtypeStruct((B, num_classes), jnp.float32),
        grid=grid,
        in_specs=[
            pl.BlockSpec((T, bt, D), lambda i: (0, i, 0)),
            pl.BlockSpec(w_in.shape, lambda i: (0, 0)),
            pl.BlockSpec(w_rec.shape, lambda i: (0, 0)),
            pl.BlockSpec(b.shape, lambda i: (0, 0)),
            pl.BlockSpec(fc_w.shape, lambda i: (0, 0)),
            pl.BlockSpec(fc_b.shape, lambda i: (0, 0)),
        ],
        out_specs=pl.BlockSpec((bt, num_classes), lambda i: (i, 0)),
        compiler_params=pltpu.CompilerParams(
            dimension_semantics=("parallel",)),
    )(x_tm, w_in, w_rec, b, fc_w, fc_b)


def reference(x, params, hidden_dim):
    """Pure-JAX mirror of the PyTorch forward for correctness check."""
    B, T, D = x.shape
    H = hidden_dim

    def cell(xt, h, c, w_ih, w_hh, bb):
        g = xt @ w_ih + h @ w_hh + bb
        i = jax.nn.sigmoid(g[:, 0:H])
        f = jax.nn.sigmoid(g[:, H:2 * H])
        gg = jnp.tanh(g[:, 2 * H:3 * H])
        o = jax.nn.sigmoid(g[:, 3 * H:4 * H])
        c = f * c + i * gg
        h = o * jnp.tanh(c)
        return h, c

    h_f = c_f = h_b = c_b = jnp.zeros((B, H), jnp.float32)
    for t in range(T):
        h_f, c_f = cell(x[:, t, :], h_f, c_f,
                        params["w_ih_f"], params["w_hh_f"], params["b_f"])
        h_b, c_b = cell(x[:, T - 1 - t, :], h_b, c_b,
                        params["w_ih_b"], params["w_hh_b"], params["b_b"])
    hcat = jnp.concatenate([h_f, h_b], axis=1)
    return hcat @ params["fc_w"] + params["fc_b"]


if __name__ == "__main__":
    B, T, D, H, C = 4, 8, 16, 32, 8  # batch, seq, input_dim, hidden_dim, num_classes

    key = jax.random.PRNGKey(0)
    ks = jax.random.split(key, 10)
    bound = 1.0 / (H ** 0.5)

    def u(k, shape):
        return jax.random.uniform(k, shape, jnp.float32, -bound, bound)

    params = {
        # stored transposed vs. PyTorch: (D, 4H), (H, 4H); b = b_ih + b_hh;
        # gate order [i, f, g, o] exactly as torch.nn.LSTM
        "w_ih_f": u(ks[0], (D, 4 * H)),
        "w_hh_f": u(ks[1], (H, 4 * H)),
        "b_f":    u(ks[2], (1, 4 * H)) + u(ks[3], (1, 4 * H)),
        "w_ih_b": u(ks[4], (D, 4 * H)),
        "w_hh_b": u(ks[5], (H, 4 * H)),
        "b_b":    u(ks[6], (1, 4 * H)) + u(ks[7], (1, 4 * H)),
        # fc: PyTorch weight is (C, 2H); store transposed (2H, C)
        "fc_w":   u(ks[8], (2 * H, C)),
        "fc_b":   u(ks[9], (1, C)),
    }

    x = jax.random.normal(jax.random.PRNGKey(42), (B, T, D), jnp.float32)

    out = lstm_classifier(x, params, H, C)
    out = jax.block_until_ready(out)

    ref = reference(x, params, H)
    assert out.shape == (B, C)
    assert jnp.allclose(out, ref, atol=1e-4, rtol=1e-4), "mismatch vs reference"

    print("KERNEL_OK")
</pallas_src>

<mosaic_0001>
module attributes {stable_mosaic.version = 11 : i64} {
  func.func @lstm_classifier_kernel(%arg0: i32, %arg1: memref<8x4x16xf32, #tpu.memory_space<vmem>>, %arg2: memref<16x256xf32, #tpu.memory_space<vmem>>, %arg3: memref<64x256xf32, #tpu.memory_space<vmem>>, %arg4: memref<1x256xf32, #tpu.memory_space<vmem>>, %arg5: memref<64x8xf32, #tpu.memory_space<vmem>>, %arg6: memref<1x8xf32, #tpu.memory_space<vmem>>, %arg7: memref<4x8xf32, #tpu.memory_space<vmem>>) attributes {dimension_semantics = [#tpu.dimension_semantics<parallel>], iteration_bounds = array<i64: 1>, scalar_prefetch = 0 : i64, scratch_operands = 0 : i64, tpu.core_type = #tpu.core_type<tc>, window_params = [{transform_indices = @transform_0, window_bounds = array<i64: 8, 4, 16>}, {pipeline_mode = #tpu.pipeline_mode<synchronous>, transform_indices = @transform_1, window_bounds = array<i64: 16, 256>}, {pipeline_mode = #tpu.pipeline_mode<synchronous>, transform_indices = @transform_2, window_bounds = array<i64: 64, 256>}, {pipeline_mode = #tpu.pipeline_mode<synchronous>, transform_indices = @transform_3, window_bounds = array<i64: 1, 256>}, {pipeline_mode = #tpu.pipeline_mode<synchronous>, transform_indices = @transform_4, window_bounds = array<i64: 64, 8>}, {pipeline_mode = #tpu.pipeline_mode<synchronous>, transform_indices = @transform_5, window_bounds = array<i64: 1, 8>}, {transform_indices = @transform_6, window_bounds = array<i64: 4, 8>}]} {
    %c0 = arith.constant 0 : index
    %c0_0 = arith.constant 0 : index
    %c0_1 = arith.constant 0 : index
    %0 = vector.load %arg1[%c0, %c0_0, %c0_1] : memref<8x4x16xf32, #tpu.memory_space<vmem>>, vector<8x4x16xf32>
    %1 = vector.shape_cast %0 : vector<8x4x16xf32> to vector<32x16xf32>
    %c0_2 = arith.constant 0 : index
    %c0_3 = arith.constant 0 : index
    %2 = vector.load %arg2[%c0_2, %c0_3] : memref<16x256xf32, #tpu.memory_space<vmem>>, vector<16x256xf32>
    %cst = arith.constant dense<0.000000e+00> : vector<32x256xf32>
    %3 = tpu.matmul %1, %2, %cst {dimension_numbers = #tpu.dot_dimension_numbers<[1], [0], [0], [1], [0, 0, 1, 1], [], []>} : vector<32x16xf32>, vector<16x256xf32>, vector<32x256xf32> -> vector<32x256xf32>
    %c0_4 = arith.constant 0 : index
    %c0_5 = arith.constant 0 : index
    %4 = vector.load %arg4[%c0_4, %c0_5] : memref<1x256xf32, #tpu.memory_space<vmem>>, vector<1x256xf32>
    %5 = vector.broadcast %4 : vector<1x256xf32> to vector<32x256xf32>
    %6 = arith.addf %3, %5 : vector<32x256xf32>
    %c0_6 = arith.constant 0 : index
    %c0_7 = arith.constant 0 : index
    %7 = vector.load %arg3[%c0_6, %c0_7] : memref<64x256xf32, #tpu.memory_space<vmem>>, vector<64x256xf32>
    %8 = tpu.iota {dimensions = array<i32: 1>} : vector<4x256xi32>
    %c64_i32 = arith.constant 64 : i32
    %c0_i32 = arith.constant 0 : i32
    %9 = arith.cmpi eq, %c64_i32, %c0_i32 : i32
    %c1_i32 = arith.constant 1 : i32
    %10 = arith.select %9, %c1_i32, %c64_i32 : i32
    %11 = vector.broadcast %10 : i32 to vector<4x256xi32>
    %12 = arith.remsi %8, %11 : vector<4x256xi32>
    %c0_i32_8 = arith.constant 0 : i32
    %13 = vector.broadcast %c0_i32_8 : i32 to vector<4x256xi32>
    %14 = arith.cmpi ne, %12, %13 : vector<4x256xi32>
    %c0_i32_9 = arith.constant 0 : i32
    %15 = vector.broadcast %c0_i32_9 : i32 to vector<4x256xi32>
    %16 = arith.cmpi slt, %12, %15 : vector<4x256xi32>
    %c0_i32_10 = arith.constant 0 : i32
    %17 = arith.cmpi slt, %10, %c0_i32_10 : i32
    %18 = vector.broadcast %17 : i1 to vector<4x256xi1>
    %19 = vector.broadcast %18 : vector<4x256xi1> to vector<4x256xi1>
    %20 = arith.xori %16, %19 : vector<4x256xi1>
    %21 = arith.andi %20, %14 : vector<4x256xi1>
    %22 = vector.broadcast %10 : i32 to vector<4x256xi32>
    %23 = arith.addi %12, %22 : vector<4x256xi32>
    %24 = arith.select %21, %23, %12 : vector<4x256xi1>, vector<4x256xi32>
    %c32_i32 = arith.constant 32 : i32
    %25 = vector.broadcast %c32_i32 : i32 to vector<4x256xi32>
    %26 = arith.cmpi slt, %24, %25 : vector<4x256xi32>
    %c128_i32 = arith.constant 128 : i32
    %27 = vector.broadcast %c128_i32 : i32 to vector<4x256xi32>
    %28 = arith.cmpi sge, %8, %27 : vector<4x256xi32>
    %c192_i32 = arith.constant 192 : i32
    %29 = vector.broadcast %c192_i32 : i32 to vector<4x256xi32>
    %30 = arith.cmpi slt, %8, %29 : vector<4x256xi32>
    %31 = arith.andi %28, %30 : vector<4x256xi1>
    %cst_11 = arith.constant 0.000000e+00 : f32
    %32 = vector.broadcast %cst_11 : f32 to vector<4x64xf32>
    %cst_12 = arith.constant 0.000000e+00 : f32
    %33 = vector.broadcast %cst_12 : f32 to vector<4x64xf32>
    %34 = vector.extract_strided_slice %6 {offsets = [0, 0], sizes = [4, 256], strides = [1, 1]} : vector<32x256xf32> to vector<4x256xf32>
    %35 = vector.extract_strided_slice %6 {offsets = [28, 0], sizes = [4, 256], strides = [1, 1]} : vector<32x256xf32> to vector<4x256xf32>
    %36 = arith.select %26, %34, %35 : vector<4x256xi1>, vector<4x256xf32>
    %cst_13 = arith.constant dense<0.000000e+00> : vector<4x256xf32>
    %37 = tpu.matmul %32, %7, %cst_13 {dimension_numbers = #tpu.dot_dimension_numbers<[1], [0], [0], [1], [0, 0, 1, 1], [], []>} : vector<4x64xf32>, vector<64x256xf32>, vector<4x256xf32> -> vector<4x256xf32>
    %38 = arith.addf %36, %37 : vector<4x256xf32>
    %39 = math.tanh %38 : vector<4x256xf32>
    %40 = arith.negf %38 : vector<4x256xf32>
    %41 = math.exp %40 : vector<4x256xf32>
    %cst_14 = arith.constant 1.000000e+00 : f32
    %42 = vector.broadcast %cst_14 : f32 to vector<4x256xf32>
    %43 = arith.addf %42, %41 : vector<4x256xf32>
    %44 = arith.divf %42, %43 : vector<4x256xf32>
    %45 = arith.select %31, %39, %44 : vector<4x256xi1>, vector<4x256xf32>
    %46 = vector.extract_strided_slice %45 {offsets = [0, 0], sizes = [4, 64], strides = [1, 1]} : vector<4x256xf32> to vector<4x64xf32>
    %47 = vector.extract_strided_slice %45 {offsets = [0, 64], sizes = [4, 64], strides = [1, 1]} : vector<4x256xf32> to vector<4x64xf32>
    %48 = vector.extract_strided_slice %45 {offsets = [0, 128], sizes = [4, 64], strides = [1, 1]} : vector<4x256xf32> to vector<4x64xf32>
    %49 = vector.extract_strided_slice %45 {offsets = [0, 192], sizes = [4, 64], strides = [1, 1]} : vector<4x256xf32> to vector<4x64xf32>
    %50 = arith.mulf %47, %33 : vector<4x64xf32>
    %51 = arith.mulf %46, %48 : vector<4x64xf32>
    %52 = arith.addf %50, %51 : vector<4x64xf32>
    %53 = math.tanh %52 : vector<4x64xf32>
    %54 = arith.mulf %49, %53 : vector<4x64xf32>
    %55 = vector.extract_strided_slice %6 {offsets = [4, 0], sizes = [4, 256], strides = [1, 1]} : vector<32x256xf32> to vector<4x256xf32>
    %56 = vector.extract_strided_slice %6 {offsets = [24, 0], sizes = [4, 256], strides = [1, 1]} : vector<32x256xf32> to vector<4x256xf32>
    %57 = arith.select %26, %55, %56 : vector<4x256xi1>, vector<4x256xf32>
    %cst_15 = arith.constant dense<0.000000e+00> : vector<4x256xf32>
    %58 = tpu.matmul %54, %7, %cst_15 {dimension_numbers = #tpu.dot_dimension_numbers<[1], [0], [0], [1], [0, 0, 1, 1], [], []>} : vector<4x64xf32>, vector<64x256xf32>, vector<4x256xf32> -> vector<4x256xf32>
    %59 = arith.addf %57, %58 : vector<4x256xf32>
    %60 = math.tanh %59 : vector<4x256xf32>
    %61 = arith.negf %59 : vector<4x256xf32>
    %62 = math.exp %61 : vector<4x256xf32>
    %cst_16 = arith.constant 1.000000e+00 : f32
    %63 = vector.broadcast %cst_16 : f32 to vector<4x256xf32>
    %64 = arith.addf %63, %62 : vector<4x256xf32>
    %65 = arith.divf %63, %64 : vector<4x256xf32>
    %66 = arith.select %31, %60, %65 : vector<4x256xi1>, vector<4x256xf32>
    %67 = vector.extract_strided_slice %66 {offsets = [0, 0], sizes = [4, 64], strides = [1, 1]} : vector<4x256xf32> to vector<4x64xf32>
    %68 = vector.extract_strided_slice %66 {offsets = [0, 64], sizes = [4, 64], strides = [1, 1]} : vector<4x256xf32> to vector<4x64xf32>
    %69 = vector.extract_strided_slice %66 {offsets = [0, 128], sizes = [4, 64], strides = [1, 1]} : vector<4x256xf32> to vector<4x64xf32>
    %70 = vector.extract_strided_slice %66 {offsets = [0, 192], sizes = [4, 64], strides = [1, 1]} : vector<4x256xf32> to vector<4x64xf32>
    %71 = arith.mulf %68, %52 : vector<4x64xf32>
    %72 = arith.mulf %67, %69 : vector<4x64xf32>
    %73 = arith.addf %71, %72 : vector<4x64xf32>
    %74 = math.tanh %73 : vector<4x64xf32>
    %75 = arith.mulf %70, %74 : vector<4x64xf32>
    %76 = vector.extract_strided_slice %6 {offsets = [8, 0], sizes = [4, 256], strides = [1, 1]} : vector<32x256xf32> to vector<4x256xf32>
    %77 = vector.extract_strided_slice %6 {offsets = [20, 0], sizes = [4, 256], strides = [1, 1]} : vector<32x256xf32> to vector<4x256xf32>
    %78 = arith.select %26, %76, %77 : vector<4x256xi1>, vector<4x256xf32>
    %cst_17 = arith.constant dense<0.000000e+00> : vector<4x256xf32>
    %79 = tpu.matmul %75, %7, %cst_17 {dimension_numbers = #tpu.dot_dimension_numbers<[1], [0], [0], [1], [0, 0, 1, 1], [], []>} : vector<4x64xf32>, vector<64x256xf32>, vector<4x256xf32> -> vector<4x256xf32>
    %80 = arith.addf %78, %79 : vector<4x256xf32>
    %81 = math.tanh %80 : vector<4x256xf32>
    %82 = arith.negf %80 : vector<4x256xf32>
    %83 = math.exp %82 : vector<4x256xf32>
    %cst_18 = arith.constant 1.000000e+00 : f32
    %84 = vector.broadcast %cst_18 : f32 to vector<4x256xf32>
    %85 = arith.addf %84, %83 : vector<4x256xf32>
    %86 = arith.divf %84, %85 : vector<4x256xf32>
    %87 = arith.select %31, %81, %86 : vector<4x256xi1>, vector<4x256xf32>
    %88 = vector.extract_strided_slice %87 {offsets = [0, 0], sizes = [4, 64], strides = [1, 1]} : vector<4x256xf32> to vector<4x64xf32>
    %89 = vector.extract_strided_slice %87 {offsets = [0, 64], sizes = [4, 64], strides = [1, 1]} : vector<4x256xf32> to vector<4x64xf32>
    %90 = vector.extract_strided_slice %87 {offsets = [0, 128], sizes = [4, 64], strides = [1, 1]} : vector<4x256xf32> to vector<4x64xf32>
    %91 = vector.extract_strided_slice %87 {offsets = [0, 192], sizes = [4, 64], strides = [1, 1]} : vector<4x256xf32> to vector<4x64xf32>
    %92 = arith.mulf %89, %73 : vector<4x64xf32>
    %93 = arith.mulf %88, %90 : vector<4x64xf32>
    %94 = arith.addf %92, %93 : vector<4x64xf32>
    %95 = math.tanh %94 : vector<4x64xf32>
    %96 = arith.mulf %91, %95 : vector<4x64xf32>
    %97 = vector.extract_strided_slice %6 {offsets = [12, 0], sizes = [4, 256], strides = [1, 1]} : vector<32x256xf32> to vector<4x256xf32>
    %98 = vector.extract_strided_slice %6 {offsets = [16, 0], sizes = [4, 256], strides = [1, 1]} : vector<32x256xf32> to vector<4x256xf32>
    %99 = arith.select %26, %97, %98 : vector<4x256xi1>, vector<4x256xf32>
    %cst_19 = arith.constant dense<0.000000e+00> : vector<4x256xf32>
    %100 = tpu.matmul %96, %7, %cst_19 {dimension_numbers = #tpu.dot_dimension_numbers<[1], [0], [0], [1], [0, 0, 1, 1], [], []>} : vector<4x64xf32>, vector<64x256xf32>, vector<4x256xf32> -> vector<4x256xf32>
    %101 = arith.addf %99, %100 : vector<4x256xf32>
    %102 = math.tanh %101 : vector<4x256xf32>
    %103 = arith.negf %101 : vector<4x256xf32>
    %104 = math.exp %103 : vector<4x256xf32>
    %cst_20 = arith.constant 1.000000e+00 : f32
    %105 = vector.broadcast %cst_20 : f32 to vector<4x256xf32>
    %106 = arith.addf %105, %104 : vector<4x256xf32>
    %107 = arith.divf %105, %106 : vector<4x256xf32>
    %108 = arith.select %31, %102, %107 : vector<4x256xi1>, vector<4x256xf32>
    %109 = vector.extract_strided_slice %108 {offsets = [0, 0], sizes = [4, 64], strides = [1, 1]} : vector<4x256xf32> to vector<4x64xf32>
    %110 = vector.extract_strided_slice %108 {offsets = [0, 64], sizes = [4, 64], strides = [1, 1]} : vector<4x256xf32> to vector<4x64xf32>
    %111 = vector.extract_strided_slice %108 {offsets = [0, 128], sizes = [4, 64], strides = [1, 1]} : vector<4x256xf32> to vector<4x64xf32>
    %112 = vector.extract_strided_slice %108 {offsets = [0, 192], sizes = [4, 64], strides = [1, 1]} : vector<4x256xf32> to vector<4x64xf32>
    %113 = arith.mulf %110, %94 : vector<4x64xf32>
    %114 = arith.mulf %109, %111 : vector<4x64xf32>
    %115 = arith.addf %113, %114 : vector<4x64xf32>
    %116 = math.tanh %115 : vector<4x64xf32>
    %117 = arith.mulf %112, %116 : vector<4x64xf32>
    %118 = vector.extract_strided_slice %6 {offsets = [16, 0], sizes = [4, 256], strides = [1, 1]} : vector<32x256xf32> to vector<4x256xf32>
    %119 = vector.extract_strided_slice %6 {offsets = [12, 0], sizes = [4, 256], strides = [1, 1]} : vector<32x256xf32> to vector<4x256xf32>
    %120 = arith.select %26, %118, %119 : vector<4x256xi1>, vector<4x256xf32>
    %cst_21 = arith.constant dense<0.000000e+00> : vector<4x256xf32>
    %121 = tpu.matmul %117, %7, %cst_21 {dimension_numbers = #tpu.dot_dimension_numbers<[1], [0], [0], [1], [0, 0, 1, 1], [], []>} : vector<4x64xf32>, vector<64x256xf32>, vector<4x256xf32> -> vector<4x256xf32>
    %122 = arith.addf %120, %121 : vector<4x256xf32>
    %123 = math.tanh %122 : vector<4x256xf32>
    %124 = arith.negf %122 : vector<4x256xf32>
    %125 = math.exp %124 : vector<4x256xf32>
    %cst_22 = arith.constant 1.000000e+00 : f32
    %126 = vector.broadcast %cst_22 : f32 to vector<4x256xf32>
    %127 = arith.addf %126, %125 : vector<4x256xf32>
    %128 = arith.divf %126, %127 : vector<4x256xf32>
    %129 = arith.select %31, %123, %128 : vector<4x256xi1>, vector<4x256xf32>
    %130 = vector.extract_strided_slice %129 {offsets = [0, 0], sizes = [4, 64], strides = [1, 1]} : vector<4x256xf32> to vector<4x64xf32>
    %131 = vector.extract_strided_slice %129 {offsets = [0, 64], sizes = [4, 64], strides = [1, 1]} : vector<4x256xf32> to vector<4x64xf32>
    %132 = vector.extract_strided_slice %129 {offsets = [0, 128], sizes = [4, 64], strides = [1, 1]} : vector<4x256xf32> to vector<4x64xf32>
    %133 = vector.extract_strided_slice %129 {offsets = [0, 192], sizes = [4, 64], strides = [1, 1]} : vector<4x256xf32> to vector<4x64xf32>
    %134 = arith.mulf %131, %115 : vector<4x64xf32>
    %135 = arith.mulf %130, %132 : vector<4x64xf32>
    %136 = arith.addf %134, %135 : vector<4x64xf32>
    %137 = math.tanh %136 : vector<4x64xf32>
    %138 = arith.mulf %133, %137 : vector<4x64xf32>
    %139 = vector.extract_strided_slice %6 {offsets = [20, 0], sizes = [4, 256], strides = [1, 1]} : vector<32x256xf32> to vector<4x256xf32>
    %140 = vector.extract_strided_slice %6 {offsets = [8, 0], sizes = [4, 256], strides = [1, 1]} : vector<32x256xf32> to vector<4x256xf32>
    %141 = arith.select %26, %139, %140 : vector<4x256xi1>, vector<4x256xf32>
    %cst_23 = arith.constant dense<0.000000e+00> : vector<4x256xf32>
    %142 = tpu.matmul %138, %7, %cst_23 {dimension_numbers = #tpu.dot_dimension_numbers<[1], [0], [0], [1], [0, 0, 1, 1], [], []>} : vector<4x64xf32>, vector<64x256xf32>, vector<4x256xf32> -> vector<4x256xf32>
    %143 = arith.addf %141, %142 : vector<4x256xf32>
    %144 = math.tanh %143 : vector<4x256xf32>
    %145 = arith.negf %143 : vector<4x256xf32>
    %146 = math.exp %145 : vector<4x256xf32>
    %cst_24 = arith.constant 1.000000e+00 : f32
    %147 = vector.broadcast %cst_24 : f32 to vector<4x256xf32>
    %148 = arith.addf %147, %146 : vector<4x256xf32>
    %149 = arith.divf %147, %148 : vector<4x256xf32>
    %150 = arith.select %31, %144, %149 : vector<4x256xi1>, vector<4x256xf32>
    %151 = vector.extract_strided_slice %150 {offsets = [0, 0], sizes = [4, 64], strides = [1, 1]} : vector<4x256xf32> to vector<4x64xf32>
    %152 = vector.extract_strided_slice %150 {offsets = [0, 64], sizes = [4, 64], strides = [1, 1]} : vector<4x256xf32> to vector<4x64xf32>
    %153 = vector.extract_strided_slice %150 {offsets = [0, 128], sizes = [4, 64], strides = [1, 1]} : vector<4x256xf32> to vector<4x64xf32>
    %154 = vector.extract_strided_slice %150 {offsets = [0, 192], sizes = [4, 64], strides = [1, 1]} : vector<4x256xf32> to vector<4x64xf32>
    %155 = arith.mulf %152, %136 : vector<4x64xf32>
    %156 = arith.mulf %151, %153 : vector<4x64xf32>
    %157 = arith.addf %155, %156 : vector<4x64xf32>
    %158 = math.tanh %157 : vector<4x64xf32>
    %159 = arith.mulf %154, %158 : vector<4x64xf32>
    %160 = vector.extract_strided_slice %6 {offsets = [24, 0], sizes = [4, 256], strides = [1, 1]} : vector<32x256xf32> to vector<4x256xf32>
    %161 = vector.extract_strided_slice %6 {offsets = [4, 0], sizes = [4, 256], strides = [1, 1]} : vector<32x256xf32> to vector<4x256xf32>
    %162 = arith.select %26, %160, %161 : vector<4x256xi1>, vector<4x256xf32>
    %cst_25 = arith.constant dense<0.000000e+00> : vector<4x256xf32>
    %163 = tpu.matmul %159, %7, %cst_25 {dimension_numbers = #tpu.dot_dimension_numbers<[1], [0], [0], [1], [0, 0, 1, 1], [], []>} : vector<4x64xf32>, vector<64x256xf32>, vector<4x256xf32> -> vector<4x256xf32>
    %164 = arith.addf %162, %163 : vector<4x256xf32>
    %165 = math.tanh %164 : vector<4x256xf32>
    %166 = arith.negf %164 : vector<4x256xf32>
    %167 = math.exp %166 : vector<4x256xf32>
    %cst_26 = arith.constant 1.000000e+00 : f32
    %168 = vector.broadcast %cst_26 : f32 to vector<4x256xf32>
    %169 = arith.addf %168, %167 : vector<4x256xf32>
    %170 = arith.divf %168, %169 : vector<4x256xf32>
    %171 = arith.select %31, %165, %170 : vector<4x256xi1>, vector<4x256xf32>
    %172 = vector.extract_strided_slice %171 {offsets = [0, 0], sizes = [4, 64], strides = [1, 1]} : vector<4x256xf32> to vector<4x64xf32>
    %173 = vector.extract_strided_slice %171 {offsets = [0, 64], sizes = [4, 64], strides = [1, 1]} : vector<4x256xf32> to vector<4x64xf32>
    %174 = vector.extract_strided_slice %171 {offsets = [0, 128], sizes = [4, 64], strides = [1, 1]} : vector<4x256xf32> to vector<4x64xf32>
    %175 = vector.extract_strided_slice %171 {offsets = [0, 192], sizes = [4, 64], strides = [1, 1]} : vector<4x256xf32> to vector<4x64xf32>
    %176 = arith.mulf %173, %157 : vector<4x64xf32>
    %177 = arith.mulf %172, %174 : vector<4x64xf32>
    %178 = arith.addf %176, %177 : vector<4x64xf32>
    %179 = math.tanh %178 : vector<4x64xf32>
    %180 = arith.mulf %175, %179 : vector<4x64xf32>
    %181 = vector.extract_strided_slice %6 {offsets = [28, 0], sizes = [4, 256], strides = [1, 1]} : vector<32x256xf32> to vector<4x256xf32>
    %182 = vector.extract_strided_slice %6 {offsets = [0, 0], sizes = [4, 256], strides = [1, 1]} : vector<32x256xf32> to vector<4x256xf32>
    %183 = arith.select %26, %181, %182 : vector<4x256xi1>, vector<4x256xf32>
    %cst_27 = arith.constant dense<0.000000e+00> : vector<4x256xf32>
    %184 = tpu.matmul %180, %7, %cst_27 {dimension_numbers = #tpu.dot_dimension_numbers<[1], [0], [0], [1], [0, 0, 1, 1], [], []>} : vector<4x64xf32>, vector<64x256xf32>, vector<4x256xf32> -> vector<4x256xf32>
    %185 = arith.addf %183, %184 : vector<4x256xf32>
    %186 = math.tanh %185 : vector<4x256xf32>
    %187 = arith.negf %185 : vector<4x256xf32>
    %188 = math.exp %187 : vector<4x256xf32>
    %cst_28 = arith.constant 1.000000e+00 : f32
    %189 = vector.broadcast %cst_28 : f32 to vector<4x256xf32>
    %190 = arith.addf %189, %188 : vector<4x256xf32>
    %191 = arith.divf %189, %190 : vector<4x256xf32>
    %192 = arith.select %31, %186, %191 : vector<4x256xi1>, vector<4x256xf32>
    %193 = vector.extract_strided_slice %192 {offsets = [0, 0], sizes = [4, 64], strides = [1, 1]} : vector<4x256xf32> to vector<4x64xf32>
    %194 = vector.extract_strided_slice %192 {offsets = [0, 64], sizes = [4, 64], strides = [1, 1]} : vector<4x256xf32> to vector<4x64xf32>
    %195 = vector.extract_strided_slice %192 {offsets = [0, 128], sizes = [4, 64], strides = [1, 1]} : vector<4x256xf32> to vector<4x64xf32>
    %196 = vector.extract_strided_slice %192 {offsets = [0, 192], sizes = [4, 64], strides = [1, 1]} : vector<4x256xf32> to vector<4x64xf32>
    %197 = arith.mulf %194, %178 : vector<4x64xf32>
    %198 = arith.mulf %193, %195 : vector<4x64xf32>
    %199 = arith.addf %197, %198 : vector<4x64xf32>
    %200 = math.tanh %199 : vector<4x64xf32>
    %201 = arith.mulf %196, %200 : vector<4x64xf32>
    %c0_29 = arith.constant 0 : index
    %c0_30 = arith.constant 0 : index
    %202 = vector.load %arg5[%c0_29, %c0_30] : memref<64x8xf32, #tpu.memory_space<vmem>>, vector<64x8xf32>
    %cst_31 = arith.constant dense<0.000000e+00> : vector<4x8xf32>
    %203 = tpu.matmul %201, %202, %cst_31 {dimension_numbers = #tpu.dot_dimension_numbers<[1], [0], [0], [1], [0, 0, 1, 1], [], []>} : vector<4x64xf32>, vector<64x8xf32>, vector<4x8xf32> -> vector<4x8xf32>
    %c0_32 = arith.constant 0 : index
    %c0_33 = arith.constant 0 : index
    %204 = vector.load %arg6[%c0_32, %c0_33] : memref<1x8xf32, #tpu.memory_space<vmem>>, vector<1x8xf32>
    %205 = vector.broadcast %204 : vector<1x8xf32> to vector<4x8xf32>
    %206 = arith.addf %203, %205 : vector<4x8xf32>
    %c0_34 = arith.constant 0 : index
    %c0_35 = arith.constant 0 : index
    %207 = vector.load %arg7[%c0_34, %c0_35] : memref<4x8xf32, #tpu.memory_space<vmem>>, vector<4x8xf32>
    tpu.vector_store %arg7[%c0_34, %c0_35], %206 {strides = array<i32>} : memref<4x8xf32, #tpu.memory_space<vmem>>, vector<4x8xf32>,
    return
  }
  func.func @transform_0(%arg0: i32) -> (i32, i32, i32) {
    %c0_i32 = arith.constant 0 : i32
    %c0_i32_0 = arith.constant 0 : i32
    %c0_i32_1 = arith.constant 0 : i32
    return %c0_i32, %arg0, %c0_i32_0 : i32, i32, i32
  }
  func.func @transform_1(%arg0: i32) -> (i32, i32) {
    %c0_i32 = arith.constant 0 : i32
    %c0_i32_0 = arith.constant 0 : i32
    %c0_i32_1 = arith.constant 0 : i32
    return %c0_i32, %c0_i32_0 : i32, i32
  }
  func.func @transform_2(%arg0: i32) -> (i32, i32) {
    %c0_i32 = arith.constant 0 : i32
    %c0_i32_0 = arith.constant 0 : i32
    %c0_i32_1 = arith.constant 0 : i32
    return %c0_i32, %c0_i32_0 : i32, i32
  }
  func.func @transform_3(%arg0: i32) -> (i32, i32) {
    %c0_i32 = arith.constant 0 : i32
    %c0_i32_0 = arith.constant 0 : i32
    %c0_i32_1 = arith.constant 0 : i32
    return %c0_i32, %c0_i32_0 : i32, i32
  }
  func.func @transform_4(%arg0: i32) -> (i32, i32) {
    %c0_i32 = arith.constant 0 : i32
    %c0_i32_0 = arith.constant 0 : i32
    %c0_i32_1 = arith.constant 0 : i32
    return %c0_i32, %c0_i32_0 : i32, i32
  }
  func.func @transform_5(%arg0: i32) -> (i32, i32) {
    %c0_i32 = arith.constant 0 : i32
    %c0_i32_0 = arith.constant 0 : i32
    %c0_i32_1 = arith.constant 0 : i32
    return %c0_i32, %c0_i32_0 : i32, i32
  }
  func.func @transform_6(%arg0: i32) -> (i32, i32) {
    %c0_i32 = arith.constant 0 : i32
    %c0_i32_0 = arith.constant 0 : i32
    return %arg0, %c0_i32 : i32, i32
  }
}

</mosaic_0001>

<llo_original>
// kernel: tpu_custom_call.1
$region0: #{tpu_custom_call.1}
  #allocation0 [shape = 'u32[]', space=smem, size = 0x4, offset = 0x4, fixed_abs, tag = 'smem constant byte address 0x4 - core index']
  #allocation1 [shape = 'u32[144,128]{1,0:T(1,128)}', space=vmem, size = 0x12000, scoped, tag = 'internal scratch']
  %s0 = inlined_call_operand.vmem [shape: f32[8,4,16], index: 0, kind: input, shape index: {}]
  %s1 = inlined_call_operand.vmem [shape: f32[16,256], index: 1, kind: input, shape index: {}]
  %s2 = inlined_call_operand.hbm [shape: f32[64,256], index: 2, kind: input, shape index: {}]
  %s3 = inlined_call_operand.vmem [shape: f32[1,256], index: 3, kind: input, shape index: {}]
  %s4 = inlined_call_operand.vmem [shape: f32[64,8], index: 4, kind: input, shape index: {}]
  %s5 = inlined_call_operand.vmem [shape: f32[1,8], index: 5, kind: input, shape index: {}]
  %s6 = inlined_call_operand.hbm [shape: f32[4,8], index: 6, kind: output, shape index: {}]
  %s7 = sld [smem:[#allocation0]]
  $region38: #{tpu_custom_call.1} parent=0
    _
  %s9 = ssub.s32 1, %s7
  %s10 = scalar_select 0, %s9, %s7
  $region1: #{tpu_custom_call.1} parent=0
    #allocation2 [shape = 'u8[65536]{0}', space=vmem, size = 0x10000, scoped, tag = 'input window, operand 2, single buffered']
    #allocation3 [shape = 's32[1]{0}', space=sflag, size = 0x4, scoped, tag = 'scoped memory for tpu_custom_call.1']
    #allocation4 [shape = 's32[1]{0}', space=sflag, size = 0x4, scoped, tag = 'scoped memory for tpu_custom_call.1']
    #allocation5 [shape = 'u8[2048]{0}', space=vmem, size = 0x800, scoped, tag = 'output window, operand 0, single buffered']
    %11 = vsyncpa [#allocation3], 0
    %12 = vsyncpa [#allocation4], 0
    // Predicated region
    $region2: #{tpu_custom_call.1} parent=1 // pred_check
      _
    $region3: #{tpu_custom_call.1} parent=1 // pred_check_branch
      %14 = sbr.rel (0) target = $region5
    $region4: #{tpu_custom_call.1} parent=1 // pred_region
      _
    $region5: #{tpu_custom_call.1} parent=1 // pred_fallthru
      _
    // Predicated region
    $region6: #{tpu_custom_call.1} parent=1 // pred_check
      _
    $region7: #{tpu_custom_call.1} parent=1 // pred_check_branch
      %16 = sbr.rel (0) target = $region9
    $region8: #{tpu_custom_call.1} parent=1 // pred_region
      _
    $region9: #{tpu_custom_call.1} parent=1 // pred_fallthru
      _
    // Predicated region
    $region10: #{tpu_custom_call.1} parent=1 // pred_check
      _
    $region11: #{tpu_custom_call.1} parent=1 // pred_check_branch
      %18 = sbr.rel (0) target = $region13
    $region12: #{tpu_custom_call.1} parent=1 // pred_region
      %s20 = ssub.s32 2048, 2048
      %21 = vsyncadd [#allocation3], %s20
      %s22 = sshll.u32 [#allocation2], 4
      %s23 = int_to_ptr.vmem [resolvable:$true] %s22
      %28 = dma.hbm_to_vmem [thread:$0]  %s2, 2048, %s23, [#allocation3], 256, 256, 16
    $region13: #{tpu_custom_call.1} parent=1 // pred_fallthru
      _
    // Predicated region
    $region14: #{tpu_custom_call.1} parent=1 // pred_check
      _
    $region15: #{tpu_custom_call.1} parent=1 // pred_check_branch
      %30 = sbr.rel (0) target = $region17
    $region16: #{tpu_custom_call.1} parent=1 // pred_region
      _
    $region17: #{tpu_custom_call.1} parent=1 // pred_fallthru
      _
    // Predicated region
    $region18: #{tpu_custom_call.1} parent=1 // pred_check
      _
    $region19: #{tpu_custom_call.1} parent=1 // pred_check_branch
      %32 = sbr.rel (0) target = $region21
    $region20: #{tpu_custom_call.1} parent=1 // pred_region
      _
    $region21: #{tpu_custom_call.1} parent=1 // pred_fallthru
      _
    // Predicated region
    $region22: #{tpu_custom_call.1} parent=1 // pred_check
      _
    $region23: #{tpu_custom_call.1} parent=1 // pred_check_branch
      %34 = sbr.rel (0) target = $region25
    $region24: #{tpu_custom_call.1} parent=1 // pred_region
      _
    $region25: #{tpu_custom_call.1} parent=1 // pred_fallthru
      _
    // Predicated region
    $region26: #{tpu_custom_call.1} parent=1 // pred_check
      _
    $region27: #{tpu_custom_call.1} parent=1 // pred_check_branch
      %36 = sbr.rel (0) target = $region29
    $region28: #{tpu_custom_call.1} parent=1 // pred_region
      %37 = dma.done [#allocation3], 2048
    $region29: #{tpu_custom_call.1} parent=1 // pred_fallthru
      _
    %v38 = vld [vmem:[%s0] sm:$0xf]
    %v39 = vld [vmem:[%s0 + $0x4] sm:$0xf]
    %v40 = vld [vmem:[%s0 + $0x8] sm:$0xf]
    %v41 = vld [vmem:[%s0 + $0xc] sm:$0xf]
    %v42 = vld [vmem:[%s0 + $0x10] sm:$0xf]
    %v43 = vld [vmem:[%s0 + $0x14] sm:$0xf]
    %v44 = vld [vmem:[%s0 + $0x18] sm:$0xf]
    %v45 = vld [vmem:[%s0 + $0x1c] sm:$0xf]
    %v46 = vld [vmem:[%s1] sm:$0xff]
    %v47 = vld [vmem:[%s1 + $0x8] sm:$0xff]
    %v48 = vld [vmem:[%s1 + $0x10] sm:$0xff]
    %v49 = vld [vmem:[%s1 + $0x18] sm:$0xff]
    %v50 = vld [vmem:[%s3] sm:$0x3]
    %v52 = vlaneseq
    %v53 = vshrl.u32 %v52, 7
    %v54 = vsub.s32 0, %v53
    %v55 = vrot.slane %v50, %v54
    %v56 = vlaneseq
    %v57 = vshrl.u32 %v56, 7
    %v58 = vsub.s32 1, %v57
    %v59 = vrot.slane %v50, %v58
    %v70 = vcombine.low %v38, %v39
    %v71 = vcombine.low %v40, %v41
    %v72 = vcombine.low %v42, %v43
    %v73 = vcombine.low %v44, %v45
    %vm74 = vcmask 130048
    %v75 = vsel %vm74, %v70, 0
    %v77 = vsel %vm74, %v71, 0
    %v79 = vsel %vm74, %v72, 0
    %v81 = vsel %vm74, %v73, 0
    %83 = vmatprep.subr.mxu0 0.0
    %84 = vmatpush1.msra.mxu0 0.0
    %85 = vmatprep.subr.mxu0 0.0
    %86 = vmatpush1.msra.mxu0 0.0
    %87 = vmatprep.subr.mxu0 0.0
    %88 = vmatpush1.msra.mxu0 0.0
    %89 = vmatprep.subr.mxu0 0.0
    %90 = vmatpush1.msra.mxu0 0.0
    %91 = vmatprep.subr.mxu0 0.0
    %92 = vmatpush1.msra.mxu0 0.0
    %93 = vmatprep.subr.mxu0 0.0
    %94 = vmatpush1.msra.mxu0 0.0
    %95 = vmatprep.subr.mxu0 0.0
    %96 = vmatpush1.msra.mxu0 0.0
    %97 = vmatprep.subr.mxu0 0.0
    %98 = vmatpush1.msra.mxu0 0.0
    %99 = vmatprep.subr.mxu0 0.0
    %100 = vmatpush1.msra.mxu0 0.0
    %101 = vmatprep.subr.mxu0 0.0
    %102 = vmatpush1.msra.mxu0 0.0
    %103 = vmatprep.subr.mxu0 0.0
    %104 = vmatpush1.msra.mxu0 0.0
    %105 = vmatprep.subr.mxu0 0.0
    %106 = vmatpush1.msra.mxu0 0.0
    %107 = vmatprep.subr.mxu0 0.0
    %108 = vmatpush1.msra.mxu0 0.0
    %109 = vmatprep.subr.mxu0 0.0
    %110 = vmatpush1.msra.mxu0 0.0
    %111 = vmatprep.subr.mxu0 %v49
    %112 = vmatpush1.msra.mxu0 %v48
    %113 = vmatprep.subr.mxu0 %v47
    %114 = vmatpush1.msra.mxu0 %v46
    %115 = vmatprep.subr.mxu0 0.0
    %116 = vmatpush2.msra.mxu0 0.0
    %117 = vmatprep.subr.mxu0 0.0
    %118 = vmatpush2.msra.mxu0 0.0
    %119 = vmatprep.subr.mxu0 0.0
    %120 = vmatpush2.msra.mxu0 0.0
    %121 = vmatprep.subr.mxu0 0.0
    %122 = vmatpush2.msra.mxu0 0.0
    %123 = vmatprep.subr.mxu0 0.0
    %124 = vmatpush2.msra.mxu0 0.0
    %125 = vmatprep.subr.mxu0 0.0
    %126 = vmatpush2.msra.mxu0 0.0
    %127 = vmatprep.subr.mxu0 0.0
    %128 = vmatpush2.msra.mxu0 0.0
    %129 = vmatprep.subr.mxu0 0.0
    %130 = vmatpush2.msra.mxu0 0.0
    %131 = vmatprep.subr.mxu0 0.0
    %132 = vmatpush2.msra.mxu0 0.0
    %133 = vmatprep.subr.mxu0 0.0
    %134 = vmatpush2.msra.mxu0 0.0
    %135 = vmatprep.subr.mxu0 0.0
    %136 = vmatpush2.msra.mxu0 0.0
    %137 = vmatprep.subr.mxu0 0.0
    %138 = vmatpush2.msra.mxu0 0.0
    %139 = vmatprep.subr.mxu0 0.0
    %140 = vmatpush2.msra.mxu0 0.0
    %141 = vmatprep.subr.mxu0 0.0
    %142 = vmatpush2.msra.mxu0 0.0
    %143 = vmatprep.subr.mxu0 0.0
    %144 = vmatpush2.msra.mxu0 0.0
    %145 = vmatprep.subr.mxu0 0.0
    %146 = vmatpush2.msra.mxu0 0.0
    %147 = vmatprep.mubr.f32.mxu0 0.0
    %148 = vmatmul.mubr.f32.gmra.mxu0 %v75
    %v149 = vpop.f32.mrf.mxu0
    %v150 = vadd.f32 %v55, %v149
    %v151 = vpop.f32.mrf.mxu0
    %v152 = vadd.f32 %v59, %v151
    %153 = vmatprep.mubr.f32.mxu0 0.0
    %154 = vmatmul.mubr.f32.gmra.mxu0 %v77
    %v155 = vpop.f32.mrf.mxu0
    %v156 = vadd.f32 %v55, %v155
    %v157 = vpop.f32.mrf.mxu0
    %v158 = vadd.f32 %v59, %v157
    %159 = vmatprep.mubr.f32.mxu0 0.0
    %160 = vmatmul.mubr.f32.gmra.mxu0 %v79
    %v161 = vpop.f32.mrf.mxu0
    %v162 = vadd.f32 %v55, %v161
    %v163 = vpop.f32.mrf.mxu0
    %v164 = vadd.f32 %v59, %v163
    %165 = vmatprep.mubr.f32.mxu0 0.0
    %166 = vmatmul.mubr.f32.gmra.mxu0 %v81
    %v167 = vpop.f32.mrf.mxu0
    %v168 = vadd.f32 %v55, %v167
    %v169 = vpop.f32.mrf.mxu0
    %v170 = vadd.f32 %v59, %v169
    %171 = vdwg.mxu0
    %v172 = vld [vmem:[#allocation2] sm:$0xff]
    %v173 = vld [vmem:[#allocation2 + $0x8] sm:$0xff]
    %v174 = vld [vmem:[#allocation2 + $0x10] sm:$0xff]
    %v175 = vld [vmem:[#allocation2 + $0x18] sm:$0xff]
    %v176 = vld [vmem:[#allocation2 + $0x20] sm:$0xff]
    %v177 = vld [vmem:[#allocation2 + $0x28] sm:$0xff]
    %v178 = vld [vmem:[#allocation2 + $0x30] sm:$0xff]
    %v179 = vld [vmem:[#allocation2 + $0x38] sm:$0xff]
    %v180 = vld [vmem:[#allocation2 + $0x40] sm:$0xff]
    %v181 = vld [vmem:[#allocation2 + $0x48] sm:$0xff]
    %v182 = vld [vmem:[#allocation2 + $0x50] sm:$0xff]
    %v183 = vld [vmem:[#allocation2 + $0x58] sm:$0xff]
    %v184 = vld [vmem:[#allocation2 + $0x60] sm:$0xff]
    %v185 = vld [vmem:[#allocation2 + $0x68] sm:$0xff]
    %v186 = vld [vmem:[#allocation2 + $0x70] sm:$0xff]
    %v187 = vld [vmem:[#allocation2 + $0x78] sm:$0xff]
    %v188 = vlaneseq
    %v189 = vand.u32 %v188, 127
    %v190 = vadd.s32 %v189, 128
    %vm191 = vcmp.lt.s32.totalorder %v189, 0
    %v192 = vsub.s32 0, %v189
    %v193 = vsel %vm191, %v192, %v189
    %v194 = vshrl.u32 %v193, 6
    %v195 = vand.u32 %v193, 63
    %v196 = vsub.s32 0, %v195
    %v197 = vsel %vm191, %v196, %v195
    %vm198 = vcmp.lt.s32.totalorder %v190, 0
    %v199 = vsub.s32 0, %v190
    %v200 = vsel %vm198, %v199, %v190
    %v201 = vshrl.u32 %v200, 6
    %v202 = vand.u32 %v200, 63
    %v203 = vsub.s32 0, %v202
    %v204 = vsel %vm198, %v203, %v202
    %vm205 = vcmp.ne.s32.totalorder %v197, 0
    %vm206 = vcmp.ne.s32.totalorder %v204, 0
    %vm207 = vcmp.lt.s32.totalorder %v197, 0
    %vm208 = vcmp.lt.s32.totalorder %v204, 0
    %vm209 = vmand %vm207, %vm205
    %vm210 = vmand %vm208, %vm206
    %v211 = vadd.s32 %v197, 64
    %v212 = vadd.s32 %v204, 64
    %v213 = vsel %vm209, %v211, %v197
    %v214 = vsel %vm210, %v212, %v204
    %vm215 = vcmp.lt.s32.totalorder %v213, 32
    %vm216 = vcmp.lt.s32.totalorder %v214, 32
    %vm217 = vcmp.ge.s32.totalorder %v189, 128
    %vm218 = vcmp.ge.s32.totalorder %v190, 128
    %vm219 = vcmp.lt.s32.totalorder %v189, 192
    %vm220 = vcmp.lt.s32.totalorder %v190, 192
    %vm221 = vmand %vm217, %vm219
    %vm222 = vmand %vm218, %vm220
    %v225 = vrot.slane %v168, 4
    %v226 = vrot.slane %v170, 4
    %v229 = vsel %vm215, %v150, %v225
    %v230 = vsel %vm216, %v152, %v226
    %vm231 = vcmask 523264
    %v233 = vsel %vm231, 0.0, 0
    %235 = vmatprep.subr.mxu0 0.0
    %236 = vmatpush1.msra.mxu0 0.0
    %237 = vmatprep.subr.mxu0 0.0
    %238 = vmatpush1.msra.mxu0 0.0
    %239 = vmatprep.subr.mxu0 0.0
    %240 = vmatpush1.msra.mxu0 0.0
    %241 = vmatprep.subr.mxu0 0.0
    %242 = vmatpush1.msra.mxu0 0.0
    %243 = vmatprep.subr.mxu0 0.0
    %244 = vmatpush1.msra.mxu0 0.0
    %245 = vmatprep.subr.mxu0 0.0
    %246 = vmatpush1.msra.mxu0 0.0
    %247 = vmatprep.subr.mxu0 0.0
    %248 = vmatpush1.msra.mxu0 0.0
    %249 = vmatprep.subr.mxu0 0.0
    %250 = vmatpush1.msra.mxu0 0.0
    %251 = vmatprep.subr.mxu0 %v187
    %252 = vmatpush1.msra.mxu0 %v186
    %253 = vmatprep.subr.mxu0 %v185
    %254 = vmatpush1.msra.mxu0 %v184
    %255 = vmatprep.subr.mxu0 %v183
    %256 = vmatpush1.msra.mxu0 %v182
    %257 = vmatprep.subr.mxu0 %v181
    %258 = vmatpush1.msra.mxu0 %v180
    %259 = vmatprep.subr.mxu0 %v179
    %260 = vmatpush1.msra.mxu0 %v178
    %261 = vmatprep.subr.mxu0 %v177
    %262 = vmatpush1.msra.mxu0 %v176
    %263 = vmatprep.subr.mxu0 %v175
    %264 = vmatpush1.msra.mxu0 %v174
    %265 = vmatprep.subr.mxu0 %v173
    %266 = vmatpush1.msra.mxu0 %v172
    %267 = vmatprep.subr.mxu0 0.0
    %268 = vmatpush2.msra.mxu0 0.0
    %269 = vmatprep.subr.mxu0 0.0
    %270 = vmatpush2.msra.mxu0 0.0
    %271 = vmatprep.subr.mxu0 0.0
    %272 = vmatpush2.msra.mxu0 0.0
    %273 = vmatprep.subr.mxu0 0.0
    %274 = vmatpush2.msra.mxu0 0.0
    %275 = vmatprep.subr.mxu0 0.0
    %276 = vmatpush2.msra.mxu0 0.0
    %277 = vmatprep.subr.mxu0 0.0
    %278 = vmatpush2.msra.mxu0 0.0
    %279 = vmatprep.subr.mxu0 0.0
    %280 = vmatpush2.msra.mxu0 0.0
    %281 = vmatprep.subr.mxu0 0.0
    %282 = vmatpush2.msra.mxu0 0.0
    %283 = vmatprep.subr.mxu0 0.0
    %284 = vmatpush2.msra.mxu0 0.0
    %285 = vmatprep.subr.mxu0 0.0
    %286 = vmatpush2.msra.mxu0 0.0
    %287 = vmatprep.subr.mxu0 0.0
    %288 = vmatpush2.msra.mxu0 0.0
    %289 = vmatprep.subr.mxu0 0.0
    %290 = vmatpush2.msra.mxu0 0.0
    %291 = vmatprep.subr.mxu0 0.0
    %292 = vmatpush2.msra.mxu0 0.0
    %293 = vmatprep.subr.mxu0 0.0
    %294 = vmatpush2.msra.mxu0 0.0
    %295 = vmatprep.subr.mxu0 0.0
    %296 = vmatpush2.msra.mxu0 0.0
    %297 = vmatprep.subr.mxu0 0.0
    %298 = vmatpush2.msra.mxu0 0.0
    %299 = vmatprep.mubr.f32.mxu0 0.0
    %300 = vmatmul.mubr.f32.gmra.mxu0 %v233
    %v301 = vpop.f32.mrf.mxu0
    %v302 = vadd.f32 0.0, %v301
    %v303 = vpop.f32.mrf.mxu0
    %v304 = vadd.f32 0.0, %v303
    %305 = vdwg.mxu0
    %v306 = vadd.f32 %v229, %v302
    %v307 = vadd.f32 %v230, %v304
    %v308 = vtanh.pop %v306
    %v309 = vtanh.pop %v307
    %v310 = vxor.u32 %v306, 2147483648
    %v311 = vxor.u32 %v307, 2147483648
    %v312 = vmul.f32 %v310, 1.442695
    %v313 = vpow.pop %v312
    %v314 = vmul.f32 %v311, 1.442695
    %v315 = vpow.pop %v314
    %v316 = vadd.f32 %v313, 1.0
    %v317 = vadd.f32 %v315, 1.0
    %v318 = vrcp.pop %v316
    %v319 = vmul.f32 1.0, %v318
    %v320 = vrcp.pop %v317
    %v321 = vmul.f32 1.0, %v320
    %v322 = vsel %vm221, %v308, %v319
    %v323 = vsel %vm222, %v309, %v321
    %v324 = vmul.f32 %v322, 0.0
    %v325 = vmul.f32 %v322, %v323
    %327 = vrot.lane.b32.xlu0 %v325, 64
    %v328 = vpop.permute.xlu0 %327
    %v330 = vadd.f32 %v324, %v328
    %v331 = vtanh.pop %v330
    %v332 = vmul.f32 %v323, %v331
    %334 = vrot.lane.b32.xlu0 %v332, 64
    %v335 = vpop.permute.xlu0 %334
    %v336 = vsel %vm231, %v335, 0
    %338 = vmatprep.subr.mxu0 0.0
    %339 = vmatpush1.msra.mxu0 0.0
    %340 = vmatprep.subr.mxu0 0.0
    %341 = vmatpush1.msra.mxu0 0.0
    %342 = vmatprep.subr.mxu0 0.0
    %343 = vmatpush1.msra.mxu0 0.0
    %344 = vmatprep.subr.mxu0 0.0
    %345 = vmatpush1.msra.mxu0 0.0
    %346 = vmatprep.subr.mxu0 0.0
    %347 = vmatpush1.msra.mxu0 0.0
    %348 = vmatprep.subr.mxu0 0.0
    %349 = vmatpush1.msra.mxu0 0.0
    %350 = vmatprep.subr.mxu0 0.0
    %351 = vmatpush1.msra.mxu0 0.0
    %352 = vmatprep.subr.mxu0 0.0
    %353 = vmatpush1.msra.mxu0 0.0
    %354 = vmatprep.subr.mxu0 %v187
    %355 = vmatpush1.msra.mxu0 %v186
    %356 = vmatprep.subr.mxu0 %v185
    %357 = vmatpush1.msra.mxu0 %v184
    %358 = vmatprep.subr.mxu0 %v183
    %359 = vmatpush1.msra.mxu0 %v182
    %360 = vmatprep.subr.mxu0 %v181
    %361 = vmatpush1.msra.mxu0 %v180
    %362 = vmatprep.subr.mxu0 %v179
    %363 = vmatpush1.msra.mxu0 %v178
    %364 = vmatprep.subr.mxu0 %v177
    %365 = vmatpush1.msra.mxu0 %v176
    %366 = vmatprep.subr.mxu0 %v175
    %367 = vmatpush1.msra.mxu0 %v174
    %368 = vmatprep.subr.mxu0 %v173
    %369 = vmatpush1.msra.mxu0 %v172
    %370 = vmatprep.subr.mxu0 0.0
    %371 = vmatpush2.msra.mxu0 0.0
    %372 = vmatprep.subr.mxu0 0.0
    %373 = vmatpush2.msra.mxu0 0.0
    %374 = vmatprep.subr.mxu0 0.0
    %375 = vmatpush2.msra.mxu0 0.0
    %376 = vmatprep.subr.mxu0 0.0
    %377 = vmatpush2.msra.mxu0 0.0
    %378 = vmatprep.subr.mxu0 0.0
    %379 = vmatpush2.msra.mxu0 0.0
    %380 = vmatprep.subr.mxu0 0.0
    %381 = vmatpush2.msra.mxu0 0.0
    %382 = vmatprep.subr.mxu0 0.0
    %383 = vmatpush2.msra.mxu0 0.0
    %384 = vmatprep.subr.mxu0 0.0
    %385 = vmatpush2.msra.mxu0 0.0
    %386 = vmatprep.subr.mxu0 0.0
    %387 = vmatpush2.msra.mxu0 0.0
    %388 = vmatprep.subr.mxu0 0.0
    %389 = vmatpush2.msra.mxu0 0.0
    %390 = vmatprep.subr.mxu0 0.0
    %391 = vmatpush2.msra.mxu0 0.0
    %392 = vmatprep.subr.mxu0 0.0
    %393 = vmatpush2.msra.mxu0 0.0
    %394 = vmatprep.subr.mxu0 0.0
    %395 = vmatpush2.msra.mxu0 0.0
    %396 = vmatprep.subr.mxu0 0.0
    %397 = vmatpush2.msra.mxu0 0.0
    %398 = vmatprep.subr.mxu0 0.0
    %399 = vmatpush2.msra.mxu0 0.0
    %400 = vmatprep.subr.mxu0 0.0
    %401 = vmatpush2.msra.mxu0 0.0
    %402 = vmatprep.mubr.f32.mxu0 0.0
    %403 = vmatmul.mubr.f32.gmra.mxu0 %v336
    %v404 = vpop.f32.mrf.mxu0
    %v405 = vadd.f32 0.0, %v404
    %v406 = vpop.f32.mrf.mxu0
    %v407 = vadd.f32 0.0, %v406
    %408 = vdwg.mxu0
    %v411 = vrot.slane %v405, 4
    %v412 = vrot.slane %v407, 4
    %v415 = vadd.f32 %v229, %v411
    %v416 = vadd.f32 %v230, %v412
    %v417 = vtanh.pop %v415
    %v418 = vtanh.pop %v416
    %v419 = vxor.u32 %v415, 2147483648
    %v420 = vxor.u32 %v416, 2147483648
    %v421 = vmul.f32 %v419, 1.442695
    %v422 = vpow.pop %v421
    %v423 = vmul.f32 %v420, 1.442695
    %v424 = vpow.pop %v423
    %v425 = vadd.f32 %v422, 1.0
    %v426 = vadd.f32 %v424, 1.0
    %v427 = vrcp.pop %v425
    %v428 = vmul.f32 1.0, %v427
    %v429 = vrcp.pop %v426
    %v430 = vmul.f32 1.0, %v429
    %v431 = vsel %vm221, %v417, %v428
    %v432 = vsel %vm222, %v418, %v430
    %v434 = vrot.slane %v330, 4
    %v436 = vmul.f32 %v431, %v434
    %v437 = vmul.f32 %v431, %v432
    %439 = vrot.lane.b32.xlu0 %v437, 64
    %v440 = vpop.permute.xlu0 %439
    %v442 = vadd.f32 %v436, %v440
    %v443 = vtanh.pop %v442
    %v444 = vmul.f32 %v432, %v443
    %v447 = vrot.slane %v162, 4
    %v448 = vrot.slane %v164, 4
    %v451 = vsel %vm215, %v156, %v447
    %v452 = vsel %vm216, %v158, %v448
    %v454 = vrot.slane %v444, 4
    %455 = vrot.lane.b32.xlu0 %v454, 64
    %v456 = vpop.permute.xlu0 %455
    %v457 = vsel %vm231, %v456, 0
    %459 = vmatprep.subr.mxu0 0.0
    %460 = vmatpush1.msra.mxu0 0.0
    %461 = vmatprep.subr.mxu0 0.0
    %462 = vmatpush1.msra.mxu0 0.0
    %463 = vmatprep.subr.mxu0 0.0
    %464 = vmatpush1.msra.mxu0 0.0
    %465 = vmatprep.subr.mxu0 0.0
    %466 = vmatpush1.msra.mxu0 0.0
    %467 = vmatprep.subr.mxu0 0.0
    %468 = vmatpush1.msra.mxu0 0.0
    %469 = vmatprep.subr.mxu0 0.0
    %470 = vmatpush1.msra.mxu0 0.0
    %471 = vmatprep.subr.mxu0 0.0
    %472 = vmatpush1.msra.mxu0 0.0
    %473 = vmatprep.subr.mxu0 0.0
    %474 = vmatpush1.msra.mxu0 0.0
    %475 = vmatprep.subr.mxu0 %v187
    %476 = vmatpush1.msra.mxu0 %v186
    %477 = vmatprep.subr.mxu0 %v185
    %478 = vmatpush1.msra.mxu0 %v184
    %479 = vmatprep.subr.mxu0 %v183
    %480 = vmatpush1.msra.mxu0 %v182
    %481 = vmatprep.subr.mxu0 %v181
    %482 = vmatpush1.msra.mxu0 %v180
    %483 = vmatprep.subr.mxu0 %v179
    %484 = vmatpush1.msra.mxu0 %v178
    %485 = vmatprep.subr.mxu0 %v177
    %486 = vmatpush1.msra.mxu0 %v176
    %487 = vmatprep.subr.mxu0 %v175
    %488 = vmatpush1.msra.mxu0 %v174
    %489 = vmatprep.subr.mxu0 %v173
    %490 = vmatpush1.msra.mxu0 %v172
    %491 = vmatprep.subr.mxu0 0.0
    %492 = vmatpush2.msra.mxu0 0.0
    %493 = vmatprep.subr.mxu0 0.0
    %494 = vmatpush2.msra.mxu0 0.0
    %495 = vmatprep.subr.mxu0 0.0
    %496 = vmatpush2.msra.mxu0 0.0
    %497 = vmatprep.subr.mxu0 0.0
    %498 = vmatpush2.msra.mxu0 0.0
    %499 = vmatprep.subr.mxu0 0.0
    %500 = vmatpush2.msra.mxu0 0.0
    %501 = vmatprep.subr.mxu0 0.0
    %502 = vmatpush2.msra.mxu0 0.0
    %503 = vmatprep.subr.mxu0 0.0
    %504 = vmatpush2.msra.mxu0 0.0
    %505 = vmatprep.subr.mxu0 0.0
    %506 = vmatpush2.msra.mxu0 0.0
    %507 = vmatprep.subr.mxu0 0.0
    %508 = vmatpush2.msra.mxu0 0.0
    %509 = vmatprep.subr.mxu0 0.0
    %510 = vmatpush2.msra.mxu0 0.0
    %511 = vmatprep.subr.mxu0 0.0
    %512 = vmatpush2.msra.mxu0 0.0
    %513 = vmatprep.subr.mxu0 0.0
    %514 = vmatpush2.msra.mxu0 0.0
    %515 = vmatprep.subr.mxu0 0.0
    %516 = vmatpush2.msra.mxu0 0.0
    %517 = vmatprep.subr.mxu0 0.0
    %518 = vmatpush2.msra.mxu0 0.0
    %519 = vmatprep.subr.mxu0 0.0
    %520 = vmatpush2.msra.mxu0 0.0
    %521 = vmatprep.subr.mxu0 0.0
    %522 = vmatpush2.msra.mxu0 0.0
    %523 = vmatprep.mubr.f32.mxu0 0.0
    %524 = vmatmul.mubr.f32.gmra.mxu0 %v457
    %v525 = vpop.f32.mrf.mxu0
    %v526 = vadd.f32 0.0, %v525
    %v527 = vpop.f32.mrf.mxu0
    %v528 = vadd.f32 0.0, %v527
    %529 = vdwg.mxu0
    %v530 = vadd.f32 %v451, %v526
    %v531 = vadd.f32 %v452, %v528
    %v532 = vtanh.pop %v530
    %v533 = vtanh.pop %v531
    %v534 = vxor.u32 %v530, 2147483648
    %v535 = vxor.u32 %v531, 2147483648
    %v536 = vmul.f32 %v534, 1.442695
    %v537 = vpow.pop %v536
    %v538 = vmul.f32 %v535, 1.442695
    %v539 = vpow.pop %v538
    %v540 = vadd.f32 %v537, 1.0
    %v541 = vadd.f32 %v539, 1.0
    %v542 = vrcp.pop %v540
    %v543 = vmul.f32 1.0, %v542
    %v544 = vrcp.pop %v541
    %v545 = vmul.f32 1.0, %v544
    %v546 = vsel %vm221, %v532, %v543
    %v547 = vsel %vm222, %v533, %v545
    %v549 = vrot.slane %v442, 4
    %v551 = vmul.f32 %v546, %v549
    %v552 = vmul.f32 %v546, %v547
    %554 = vrot.lane.b32.xlu0 %v552, 64
    %v555 = vpop.permute.xlu0 %554
    %v557 = vadd.f32 %v551, %v555
    %v558 = vtanh.pop %v557
    %v559 = vmul.f32 %v547, %v558
    %561 = vrot.lane.b32.xlu0 %v559, 64
    %v562 = vpop.permute.xlu0 %561
    %v563 = vsel %vm231, %v562, 0
    %565 = vmatprep.subr.mxu0 0.0
    %566 = vmatpush1.msra.mxu0 0.0
    %567 = vmatprep.subr.mxu0 0.0
    %568 = vmatpush1.msra.mxu0 0.0
    %569 = vmatprep.subr.mxu0 0.0
    %570 = vmatpush1.msra.mxu0 0.0
    %571 = vmatprep.subr.mxu0 0.0
    %572 = vmatpush1.msra.mxu0 0.0
    %573 = vmatprep.subr.mxu0 0.0
    %574 = vmatpush1.msra.mxu0 0.0
    %575 = vmatprep.subr.mxu0 0.0
    %576 = vmatpush1.msra.mxu0 0.0
    %577 = vmatprep.subr.mxu0 0.0
    %578 = vmatpush1.msra.mxu0 0.0
    %579 = vmatprep.subr.mxu0 0.0
    %580 = vmatpush1.msra.mxu0 0.0
    %581 = vmatprep.subr.mxu0 %v187
    %582 = vmatpush1.msra.mxu0 %v186
    %583 = vmatprep.subr.mxu0 %v185
    %584 = vmatpush1.msra.mxu0 %v184
    %585 = vmatprep.subr.mxu0 %v183
    %586 = vmatpush1.msra.mxu0 %v182
    %587 = vmatprep.subr.mxu0 %v181
    %588 = vmatpush1.msra.mxu0 %v180
    %589 = vmatprep.subr.mxu0 %v179
    %590 = vmatpush1.msra.mxu0 %v178
    %591 = vmatprep.subr.mxu0 %v177
    %592 = vmatpush1.msra.mxu0 %v176
    %593 = vmatprep.subr.mxu0 %v175
    %594 = vmatpush1.msra.mxu0 %v174
    %595 = vmatprep.subr.mxu0 %v173
    %596 = vmatpush1.msra.mxu0 %v172
    %597 = vmatprep.subr.mxu0 0.0
    %598 = vmatpush2.msra.mxu0 0.0
    %599 = vmatprep.subr.mxu0 0.0
    %600 = vmatpush2.msra.mxu0 0.0
    %601 = vmatprep.subr.mxu0 0.0
    %602 = vmatpush2.msra.mxu0 0.0
    %603 = vmatprep.subr.mxu0 0.0
    %604 = vmatpush2.msra.mxu0 0.0
    %605 = vmatprep.subr.mxu0 0.0
    %606 = vmatpush2.msra.mxu0 0.0
    %607 = vmatprep.subr.mxu0 0.0
    %608 = vmatpush2.msra.mxu0 0.0
    %609 = vmatprep.subr.mxu0 0.0
    %610 = vmatpush2.msra.mxu0 0.0
    %611 = vmatprep.subr.mxu0 0.0
    %612 = vmatpush2.msra.mxu0 0.0
    %613 = vmatprep.subr.mxu0 0.0
    %614 = vmatpush2.msra.mxu0 0.0
    %615 = vmatprep.subr.mxu0 0.0
    %616 = vmatpush2.msra.mxu0 0.0
    %617 = vmatprep.subr.mxu0 0.0
    %618 = vmatpush2.msra.mxu0 0.0
    %619 = vmatprep.subr.mxu0 0.0
    %620 = vmatpush2.msra.mxu0 0.0
    %621 = vmatprep.subr.mxu0 0.0
    %622 = vmatpush2.msra.mxu0 0.0
    %623 = vmatprep.subr.mxu0 0.0
    %624 = vmatpush2.msra.mxu0 0.0
    %625 = vmatprep.subr.mxu0 0.0
    %626 = vmatpush2.msra.mxu0 0.0
    %627 = vmatprep.subr.mxu0 0.0
    %628 = vmatpush2.msra.mxu0 0.0
    %629 = vmatprep.mubr.f32.mxu0 0.0
    %630 = vmatmul.mubr.f32.gmra.mxu0 %v563
    %v631 = vpop.f32.mrf.mxu0
    %v632 = vadd.f32 0.0, %v631
    %v633 = vpop.f32.mrf.mxu0
    %v634 = vadd.f32 0.0, %v633
    %635 = vdwg.mxu0
    %v638 = vrot.slane %v632, 4
    %v639 = vrot.slane %v634, 4
    %v642 = vadd.f32 %v451, %v638
    %v643 = vadd.f32 %v452, %v639
    %v644 = vtanh.pop %v642
    %v645 = vtanh.pop %v643
    %v646 = vxor.u32 %v642, 2147483648
    %v647 = vxor.u32 %v643, 2147483648
    %v648 = vmul.f32 %v646, 1.442695
    %v649 = vpow.pop %v648
    %v650 = vmul.f32 %v647, 1.442695
    %v651 = vpow.pop %v650
    %v652 = vadd.f32 %v649, 1.0
    %v653 = vadd.f32 %v651, 1.0
    %v654 = vrcp.pop %v652
    %v655 = vmul.f32 1.0, %v654
    %v656 = vrcp.pop %v653
    %v657 = vmul.f32 1.0, %v656
    %v658 = vsel %vm221, %v644, %v655
    %v659 = vsel %vm222, %v645, %v657
    %v661 = vrot.slane %v557, 4
    %v663 = vmul.f32 %v658, %v661
    %v664 = vmul.f32 %v658, %v659
    %666 = vrot.lane.b32.xlu0 %v664, 64
    %v667 = vpop.permute.xlu0 %666
    %v669 = vadd.f32 %v663, %v667
    %v670 = vtanh.pop %v669
    %v671 = vmul.f32 %v659, %v670
    %v674 = vrot.slane %v156, 4
    %v675 = vrot.slane %v158, 4
    %v678 = vsel %vm215, %v162, %v674
    %v679 = vsel %vm216, %v164, %v675
    %v681 = vrot.slane %v671, 4
    %682 = vrot.lane.b32.xlu0 %v681, 64
    %v683 = vpop.permute.xlu0 %682
    %v684 = vsel %vm231, %v683, 0
    %686 = vmatprep.subr.mxu0 0.0
    %687 = vmatpush1.msra.mxu0 0.0
    %688 = vmatprep.subr.mxu0 0.0
    %689 = vmatpush1.msra.mxu0 0.0
    %690 = vmatprep.subr.mxu0 0.0
    %691 = vmatpush1.msra.mxu0 0.0
    %692 = vmatprep.subr.mxu0 0.0
    %693 = vmatpush1.msra.mxu0 0.0
    %694 = vmatprep.subr.mxu0 0.0
    %695 = vmatpush1.msra.mxu0 0.0
    %696 = vmatprep.subr.mxu0 0.0
    %697 = vmatpush1.msra.mxu0 0.0
    %698 = vmatprep.subr.mxu0 0.0
    %699 = vmatpush1.msra.mxu0 0.0
    %700 = vmatprep.subr.mxu0 0.0
    %701 = vmatpush1.msra.mxu0 0.0
    %702 = vmatprep.subr.mxu0 %v187
    %703 = vmatpush1.msra.mxu0 %v186
    %704 = vmatprep.subr.mxu0 %v185
    %705 = vmatpush1.msra.mxu0 %v184
    %706 = vmatprep.subr.mxu0 %v183
    %707 = vmatpush1.msra.mxu0 %v182
    %708 = vmatprep.subr.mxu0 %v181
    %709 = vmatpush1.msra.mxu0 %v180
    %710 = vmatprep.subr.mxu0 %v179
    %711 = vmatpush1.msra.mxu0 %v178
    %712 = vmatprep.subr.mxu0 %v177
    %713 = vmatpush1.msra.mxu0 %v176
    %714 = vmatprep.subr.mxu0 %v175
    %715 = vmatpush1.msra.mxu0 %v174
    %716 = vmatprep.subr.mxu0 %v173
    %717 = vmatpush1.msra.mxu0 %v172
    %718 = vmatprep.subr.mxu0 0.0
    %719 = vmatpush2.msra.mxu0 0.0
    %720 = vmatprep.subr.mxu0 0.0
    %721 = vmatpush2.msra.mxu0 0.0
    %722 = vmatprep.subr.mxu0 0.0
    %723 = vmatpush2.msra.mxu0 0.0
    %724 = vmatprep.subr.mxu0 0.0
    %725 = vmatpush2.msra.mxu0 0.0
    %726 = vmatprep.subr.mxu0 0.0
    %727 = vmatpush2.msra.mxu0 0.0
    %728 = vmatprep.subr.mxu0 0.0
    %729 = vmatpush2.msra.mxu0 0.0
    %730 = vmatprep.subr.mxu0 0.0
    %731 = vmatpush2.msra.mxu0 0.0
    %732 = vmatprep.subr.mxu0 0.0
    %733 = vmatpush2.msra.mxu0 0.0
    %734 = vmatprep.subr.mxu0 0.0
    %735 = vmatpush2.msra.mxu0 0.0
    %736 = vmatprep.subr.mxu0 0.0
    %737 = vmatpush2.msra.mxu0 0.0
    %738 = vmatprep.subr.mxu0 0.0
    %739 = vmatpush2.msra.mxu0 0.0
    %740 = vmatprep.subr.mxu0 0.0
    %741 = vmatpush2.msra.mxu0 0.0
    %742 = vmatprep.subr.mxu0 0.0
    %743 = vmatpush2.msra.mxu0 0.0
    %744 = vmatprep.subr.mxu0 0.0
    %745 = vmatpush2.msra.mxu0 0.0
    %746 = vmatprep.subr.mxu0 0.0
    %747 = vmatpush2.msra.mxu0 0.0
    %748 = vmatprep.subr.mxu0 0.0
    %749 = vmatpush2.msra.mxu0 0.0
    %750 = vmatprep.mubr.f32.mxu0 0.0
    %751 = vmatmul.mubr.f32.gmra.mxu0 %v684
    %v752 = vpop.f32.mrf.mxu0
    %v753 = vadd.f32 0.0, %v752
    %v754 = vpop.f32.mrf.mxu0
    %v755 = vadd.f32 0.0, %v754
    %756 = vdwg.mxu0
    %v757 = vadd.f32 %v678, %v753
    %v758 = vadd.f32 %v679, %v755
    %v759 = vtanh.pop %v757
    %v760 = vtanh.pop %v758
    %v761 = vxor.u32 %v757, 2147483648
    %v762 = vxor.u32 %v758, 2147483648
    %v763 = vmul.f32 %v761, 1.442695
    %v764 = vpow.pop %v763
    %v765 = vmul.f32 %v762, 1.442695
    %v766 = vpow.pop %v765
    %v767 = vadd.f32 %v764, 1.0
    %v768 = vadd.f32 %v766, 1.0
    %v769 = vrcp.pop %v767
    %v770 = vmul.f32 1.0, %v769
    %v771 = vrcp.pop %v768
    %v772 = vmul.f32 1.0, %v771
    %v773 = vsel %vm221, %v759, %v770
    %v774 = vsel %vm222, %v760, %v772
    %v776 = vrot.slane %v669, 4
    %v778 = vmul.f32 %v773, %v776
    %v779 = vmul.f32 %v773, %v774
    %781 = vrot.lane.b32.xlu0 %v779, 64
    %v782 = vpop.permute.xlu0 %781
    %v784 = vadd.f32 %v778, %v782
    %v785 = vtanh.pop %v784
    %v786 = vmul.f32 %v774, %v785
    %788 = vrot.lane.b32.xlu0 %v786, 64
    %v789 = vpop.permute.xlu0 %788
    %v790 = vsel %vm231, %v789, 0
    %792 = vmatprep.subr.mxu0 0.0
    %793 = vmatpush1.msra.mxu0 0.0
    %794 = vmatprep.subr.mxu0 0.0
    %795 = vmatpush1.msra.mxu0 0.0
    %796 = vmatprep.subr.mxu0 0.0
    %797 = vmatpush1.msra.mxu0 0.0
    %798 = vmatprep.subr.mxu0 0.0
    %799 = vmatpush1.msra.mxu0 0.0
    %800 = vmatprep.subr.mxu0 0.0
    %801 = vmatpush1.msra.mxu0 0.0
    %802 = vmatprep.subr.mxu0 0.0
    %803 = vmatpush1.msra.mxu0 0.0
    %804 = vmatprep.subr.mxu0 0.0
    %805 = vmatpush1.msra.mxu0 0.0
    %806 = vmatprep.subr.mxu0 0.0
    %807 = vmatpush1.msra.mxu0 0.0
    %808 = vmatprep.subr.mxu0 %v187
    %809 = vmatpush1.msra.mxu0 %v186
    %810 = vmatprep.subr.mxu0 %v185
    %811 = vmatpush1.msra.mxu0 %v184
    %812 = vmatprep.subr.mxu0 %v183
    %813 = vmatpush1.msra.mxu0 %v182
    %814 = vmatprep.subr.mxu0 %v181
    %815 = vmatpush1.msra.mxu0 %v180
    %816 = vmatprep.subr.mxu0 %v179
    %817 = vmatpush1.msra.mxu0 %v178
    %818 = vmatprep.subr.mxu0 %v177
    %819 = vmatpush1.msra.mxu0 %v176
    %820 = vmatprep.subr.mxu0 %v175
    %821 = vmatpush1.msra.mxu0 %v174
    %822 = vmatprep.subr.mxu0 %v173
    %823 = vmatpush1.msra.mxu0 %v172
    %824 = vmatprep.subr.mxu0 0.0
    %825 = vmatpush2.msra.mxu0 0.0
    %826 = vmatprep.subr.mxu0 0.0
    %827 = vmatpush2.msra.mxu0 0.0
    %828 = vmatprep.subr.mxu0 0.0
    %829 = vmatpush2.msra.mxu0 0.0
    %830 = vmatprep.subr.mxu0 0.0
    %831 = vmatpush2.msra.mxu0 0.0
    %832 = vmatprep.subr.mxu0 0.0
    %833 = vmatpush2.msra.mxu0 0.0
    %834 = vmatprep.subr.mxu0 0.0
    %835 = vmatpush2.msra.mxu0 0.0
    %836 = vmatprep.subr.mxu0 0.0
    %837 = vmatpush2.msra.mxu0 0.0
    %838 = vmatprep.subr.mxu0 0.0
    %839 = vmatpush2.msra.mxu0 0.0
    %840 = vmatprep.subr.mxu0 0.0
    %841 = vmatpush2.msra.mxu0 0.0
    %842 = vmatprep.subr.mxu0 0.0
    %843 = vmatpush2.msra.mxu0 0.0
    %844 = vmatprep.subr.mxu0 0.0
    %845 = vmatpush2.msra.mxu0 0.0
    %846 = vmatprep.subr.mxu0 0.0
    %847 = vmatpush2.msra.mxu0 0.0
    %848 = vmatprep.subr.mxu0 0.0
    %849 = vmatpush2.msra.mxu0 0.0
    %850 = vmatprep.subr.mxu0 0.0
    %851 = vmatpush2.msra.mxu0 0.0
    %852 = vmatprep.subr.mxu0 0.0
    %853 = vmatpush2.msra.mxu0 0.0
    %854 = vmatprep.subr.mxu0 0.0
    %855 = vmatpush2.msra.mxu0 0.0
    %856 = vmatprep.mubr.f32.mxu0 0.0
    %857 = vmatmul.mubr.f32.gmra.mxu0 %v790
    %v858 = vpop.f32.mrf.mxu0
    %v859 = vadd.f32 0.0, %v858
    %v860 = vpop.f32.mrf.mxu0
    %v861 = vadd.f32 0.0, %v860
    %862 = vdwg.mxu0
    %v865 = vrot.slane %v859, 4
    %v866 = vrot.slane %v861, 4
    %v869 = vadd.f32 %v678, %v865
    %v870 = vadd.f32 %v679, %v866
    %v871 = vtanh.pop %v869
    %v872 = vtanh.pop %v870
    %v873 = vxor.u32 %v869, 2147483648
    %v874 = vxor.u32 %v870, 2147483648
    %v875 = vmul.f32 %v873, 1.442695
    %v876 = vpow.pop %v875
    %v877 = vmul.f32 %v874, 1.442695
    %v878 = vpow.pop %v877
    %v879 = vadd.f32 %v876, 1.0
    %v880 = vadd.f32 %v878, 1.0
    %v881 = vrcp.pop %v879
    %v882 = vmul.f32 1.0, %v881
    %v883 = vrcp.pop %v880
    %v884 = vmul.f32 1.0, %v883
    %v885 = vsel %vm221, %v871, %v882
    %v886 = vsel %vm222, %v872, %v884
    %v888 = vrot.slane %v784, 4
    %v890 = vmul.f32 %v885, %v888
    %v891 = vmul.f32 %v885, %v886
    %893 = vrot.lane.b32.xlu0 %v891, 64
    %v894 = vpop.permute.xlu0 %893
    %v896 = vadd.f32 %v890, %v894
    %v897 = vtanh.pop %v896
    %v898 = vmul.f32 %v886, %v897
    %v901 = vrot.slane %v150, 4
    %v902 = vrot.slane %v152, 4
    %v905 = vsel %vm215, %v168, %v901
    %v906 = vsel %vm216, %v170, %v902
    %v908 = vrot.slane %v898, 4
    %909 = vrot.lane.b32.xlu0 %v908, 64
    %v910 = vpop.permute.xlu0 %909
    %v911 = vsel %vm231, %v910, 0
    %913 = vmatprep.subr.mxu0 0.0
    %914 = vmatpush1.msra.mxu0 0.0
    %915 = vmatprep.subr.mxu0 0.0
    %916 = vmatpush1.msra.mxu0 0.0
    %917 = vmatprep.subr.mxu0 0.0
    %918 = vmatpush1.msra.mxu0 0.0
    %919 = vmatprep.subr.mxu0 0.0
    %920 = vmatpush1.msra.mxu0 0.0
    %921 = vmatprep.subr.mxu0 0.0
    %922 = vmatpush1.msra.mxu0 0.0
    %923 = vmatprep.subr.mxu0 0.0
    %924 = vmatpush1.msra.mxu0 0.0
    %925 = vmatprep.subr.mxu0 0.0
    %926 = vmatpush1.msra.mxu0 0.0
    %927 = vmatprep.subr.mxu0 0.0
    %928 = vmatpush1.msra.mxu0 0.0
    %929 = vmatprep.subr.mxu0 %v187
    %930 = vmatpush1.msra.mxu0 %v186
    %931 = vmatprep.subr.mxu0 %v185
    %932 = vmatpush1.msra.mxu0 %v184
    %933 = vmatprep.subr.mxu0 %v183
    %934 = vmatpush1.msra.mxu0 %v182
    %935 = vmatprep.subr.mxu0 %v181
    %936 = vmatpush1.msra.mxu0 %v180
    %937 = vmatprep.subr.mxu0 %v179
    %938 = vmatpush1.msra.mxu0 %v178
    %939 = vmatprep.subr.mxu0 %v177
    %940 = vmatpush1.msra.mxu0 %v176
    %941 = vmatprep.subr.mxu0 %v175
    %942 = vmatpush1.msra.mxu0 %v174
    %943 = vmatprep.subr.mxu0 %v173
    %944 = vmatpush1.msra.mxu0 %v172
    %945 = vmatprep.subr.mxu0 0.0
    %946 = vmatpush2.msra.mxu0 0.0
    %947 = vmatprep.subr.mxu0 0.0
    %948 = vmatpush2.msra.mxu0 0.0
    %949 = vmatprep.subr.mxu0 0.0
    %950 = vmatpush2.msra.mxu0 0.0
    %951 = vmatprep.subr.mxu0 0.0
    %952 = vmatpush2.msra.mxu0 0.0
    %953 = vmatprep.subr.mxu0 0.0
    %954 = vmatpush2.msra.mxu0 0.0
    %955 = vmatprep.subr.mxu0 0.0
    %956 = vmatpush2.msra.mxu0 0.0
    %957 = vmatprep.subr.mxu0 0.0
    %958 = vmatpush2.msra.mxu0 0.0
    %959 = vmatprep.subr.mxu0 0.0
    %960 = vmatpush2.msra.mxu0 0.0
    %961 = vmatprep.subr.mxu0 0.0
    %962 = vmatpush2.msra.mxu0 0.0
    %963 = vmatprep.subr.mxu0 0.0
    %964 = vmatpush2.msra.mxu0 0.0
    %965 = vmatprep.subr.mxu0 0.0
    %966 = vmatpush2.msra.mxu0 0.0
    %967 = vmatprep.subr.mxu0 0.0
    %968 = vmatpush2.msra.mxu0 0.0
    %969 = vmatprep.subr.mxu0 0.0
    %970 = vmatpush2.msra.mxu0 0.0
    %971 = vmatprep.subr.mxu0 0.0
    %972 = vmatpush2.msra.mxu0 0.0
    %973 = vmatprep.subr.mxu0 0.0
    %974 = vmatpush2.msra.mxu0 0.0
    %975 = vmatprep.subr.mxu0 0.0
    %976 = vmatpush2.msra.mxu0 0.0
    %977 = vmatprep.mubr.f32.mxu0 0.0
    %978 = vmatmul.mubr.f32.gmra.mxu0 %v911
    %v979 = vpop.f32.mrf.mxu0
    %v980 = vadd.f32 0.0, %v979
    %v981 = vpop.f32.mrf.mxu0
    %v982 = vadd.f32 0.0, %v981
    %983 = vdwg.mxu0
    %v984 = vadd.f32 %v905, %v980
    %v985 = vadd.f32 %v906, %v982
    %v986 = vtanh.pop %v984
    %v987 = vtanh.pop %v985
    %v988 = vxor.u32 %v984, 2147483648
    %v989 = vxor.u32 %v985, 2147483648
    %v990 = vmul.f32 %v988, 1.442695
    %v991 = vpow.pop %v990
    %v992 = vmul.f32 %v989, 1.442695
    %v993 = vpow.pop %v992
    %v994 = vadd.f32 %v991, 1.0
    %v995 = vadd.f32 %v993, 1.0
    %v996 = vrcp.pop %v994
    %v997 = vmul.f32 1.0, %v996
    %v998 = vrcp.pop %v995
    %v999 = vmul.f32 1.0, %v998
    %v1000 = vsel %vm221, %v986, %v997
    %v1001 = vsel %vm222, %v987, %v999
    %v1003 = vrot.slane %v896, 4
    %v1005 = vmul.f32 %v1000, %v1003
    %v1006 = vmul.f32 %v1000, %v1001
    %1008 = vrot.lane.b32.xlu0 %v1006, 64
    %v1009 = vpop.permute.xlu0 %1008
    %v1011 = vadd.f32 %v1005, %v1009
    %v1012 = vtanh.pop %v1011
    %v1013 = vmul.f32 %v1001, %v1012
    %1015 = vrot.lane.b32.xlu0 %v1013, 64
    %v1016 = vpop.permute.xlu0 %1015
    %v1017 = vsel %vm231, %v1016, 0
    %1019 = vmatprep.subr.mxu0 0.0
    %1020 = vmatpush1.msra.mxu0 0.0
    %1021 = vmatprep.subr.mxu0 0.0
    %1022 = vmatpush1.msra.mxu0 0.0
    %1023 = vmatprep.subr.mxu0 0.0
    %1024 = vmatpush1.msra.mxu0 0.0
    %1025 = vmatprep.subr.mxu0 0.0
    %1026 = vmatpush1.msra.mxu0 0.0
    %1027 = vmatprep.subr.mxu0 0.0
    %1028 = vmatpush1.msra.mxu0 0.0
    %1029 = vmatprep.subr.mxu0 0.0
    %1030 = vmatpush1.msra.mxu0 0.0
    %1031 = vmatprep.subr.mxu0 0.0
    %1032 = vmatpush1.msra.mxu0 0.0
    %1033 = vmatprep.subr.mxu0 0.0
    %1034 = vmatpush1.msra.mxu0 0.0
    %1035 = vmatprep.subr.mxu0 %v187
    %1036 = vmatpush1.msra.mxu0 %v186
    %1037 = vmatprep.subr.mxu0 %v185
    %1038 = vmatpush1.msra.mxu0 %v184
    %1039 = vmatprep.subr.mxu0 %v183
    %1040 = vmatpush1.msra.mxu0 %v182
    %1041 = vmatprep.subr.mxu0 %v181
    %1042 = vmatpush1.msra.mxu0 %v180
    %1043 = vmatprep.subr.mxu0 %v179
    %1044 = vmatpush1.msra.mxu0 %v178
    %1045 = vmatprep.subr.mxu0 %v177
    %1046 = vmatpush1.msra.mxu0 %v176
    %1047 = vmatprep.subr.mxu0 %v175
    %1048 = vmatpush1.msra.mxu0 %v174
    %1049 = vmatprep.subr.mxu0 %v173
    %1050 = vmatpush1.msra.mxu0 %v172
    %1051 = vmatprep.subr.mxu0 0.0
    %1052 = vmatpush2.msra.mxu0 0.0
    %1053 = vmatprep.subr.mxu0 0.0
    %1054 = vmatpush2.msra.mxu0 0.0
    %1055 = vmatprep.subr.mxu0 0.0
    %1056 = vmatpush2.msra.mxu0 0.0
    %1057 = vmatprep.subr.mxu0 0.0
    %1058 = vmatpush2.msra.mxu0 0.0
    %1059 = vmatprep.subr.mxu0 0.0
    %1060 = vmatpush2.msra.mxu0 0.0
    %1061 = vmatprep.subr.mxu0 0.0
    %1062 = vmatpush2.msra.mxu0 0.0
    %1063 = vmatprep.subr.mxu0 0.0
    %1064 = vmatpush2.msra.mxu0 0.0
    %1065 = vmatprep.subr.mxu0 0.0
    %1066 = vmatpush2.msra.mxu0 0.0
    %1067 = vmatprep.subr.mxu0 0.0
    %1068 = vmatpush2.msra.mxu0 0.0
    %1069 = vmatprep.subr.mxu0 0.0
    %1070 = vmatpush2.msra.mxu0 0.0
    %1071 = vmatprep.subr.mxu0 0.0
    %1072 = vmatpush2.msra.mxu0 0.0
    %1073 = vmatprep.subr.mxu0 0.0
    %1074 = vmatpush2.msra.mxu0 0.0
    %1075 = vmatprep.subr.mxu0 0.0
    %1076 = vmatpush2.msra.mxu0 0.0
    %1077 = vmatprep.subr.mxu0 0.0
    %1078 = vmatpush2.msra.mxu0 0.0
    %1079 = vmatprep.subr.mxu0 0.0
    %1080 = vmatpush2.msra.mxu0 0.0
    %1081 = vmatprep.subr.mxu0 0.0
    %1082 = vmatpush2.msra.mxu0 0.0
    %1083 = vmatprep.mubr.f32.mxu0 0.0
    %1084 = vmatmul.mubr.f32.gmra.mxu0 %v1017
    %v1085 = vpop.f32.mrf.mxu0
    %v1086 = vadd.f32 0.0, %v1085
    %v1087 = vpop.f32.mrf.mxu0
    %v1088 = vadd.f32 0.0, %v1087
    %1089 = vdwg.mxu0
    %v1092 = vrot.slane %v1086, 4
    %v1093 = vrot.slane %v1088, 4
    %v1096 = vadd.f32 %v905, %v1092
    %v1097 = vadd.f32 %v906, %v1093
    %v1098 = vtanh.pop %v1096
    %v1099 = vtanh.pop %v1097
    %v1100 = vxor.u32 %v1096, 2147483648
    %v1101 = vxor.u32 %v1097, 2147483648
    %v1102 = vmul.f32 %v1100, 1.442695
    %v1103 = vpow.pop %v1102
    %v1104 = vmul.f32 %v1101, 1.442695
    %v1105 = vpow.pop %v1104
    %v1106 = vadd.f32 %v1103, 1.0
    %v1107 = vadd.f32 %v1105, 1.0
    %v1108 = vrcp.pop %v1106
    %v1109 = vmul.f32 1.0, %v1108
    %v1110 = vrcp.pop %v1107
    %v1111 = vmul.f32 1.0, %v1110
    %v1112 = vsel %vm221, %v1098, %v1109
    %v1113 = vsel %vm222, %v1099, %v1111
    %v1115 = vrot.slane %v1011, 4
    %v1117 = vmul.f32 %v1112, %v1115
    %v1118 = vmul.f32 %v1112, %v1113
    %1120 = vrot.lane.b32.xlu0 %v1118, 64
    %v1121 = vpop.permute.xlu0 %1120
    %v1123 = vadd.f32 %v1117, %v1121
    %v1124 = vtanh.pop %v1123
    %v1125 = vmul.f32 %v1113, %v1124
    %v1126 = vld [vmem:[%s4] sm:$0xff]
    %v1127 = vld [vmem:[%s4 + $0x8] sm:$0xff]
    %v1128 = vld [vmem:[%s4 + $0x10] sm:$0xff]
    %v1129 = vld [vmem:[%s4 + $0x18] sm:$0xff]
    %v1130 = vld [vmem:[%s4 + $0x20] sm:$0xff]
    %v1131 = vld [vmem:[%s4 + $0x28] sm:$0xff]
    %v1132 = vld [vmem:[%s4 + $0x30] sm:$0xff]
    %v1133 = vld [vmem:[%s4 + $0x38] sm:$0xff]
    %v1134 = vld [vmem:[%s5] sm:$0x1]
    %v1136 = vlaneseq
    %v1137 = vshrl.u32 %v1136, 7
    %v1138 = vsub.s32 0, %v1137
    %v1139 = vrot.slane %v1134, %v1138
    %v1142 = vrot.slane %v1125, 4
    %1143 = vrot.lane.b32.xlu0 %v1142, 64
    %v1144 = vpop.permute.xlu0 %1143
    %v1145 = vsel %vm231, %v1144, 0
    %1147 = vmatprep.subr.mxu0 0.0
    %1148 = vmatpush1.msra.mxu0 0.0
    %1149 = vmatprep.subr.mxu0 0.0
    %1150 = vmatpush1.msra.mxu0 0.0
    %1151 = vmatprep.subr.mxu0 0.0
    %1152 = vmatpush1.msra.mxu0 0.0
    %1153 = vmatprep.subr.mxu0 0.0
    %1154 = vmatpush1.msra.mxu0 0.0
    %1155 = vmatprep.subr.mxu0 0.0
    %1156 = vmatpush1.msra.mxu0 0.0
    %1157 = vmatprep.subr.mxu0 0.0
    %1158 = vmatpush1.msra.mxu0 0.0
    %1159 = vmatprep.subr.mxu0 0.0
    %1160 = vmatpush1.msra.mxu0 0.0
    %1161 = vmatprep.subr.mxu0 0.0
    %1162 = vmatpush1.msra.mxu0 0.0
    %1163 = vmatprep.subr.mxu0 0.0
    %1164 = vmatpush1.msra.mxu0 %v1133
    %1165 = vmatprep.subr.mxu0 0.0
    %1166 = vmatpush1.msra.mxu0 %v1132
    %1167 = vmatprep.subr.mxu0 0.0
    %1168 = vmatpush1.msra.mxu0 %v1131
    %1169 = vmatprep.subr.mxu0 0.0
    %1170 = vmatpush1.msra.mxu0 %v1130
    %1171 = vmatprep.subr.mxu0 0.0
    %1172 = vmatpush1.msra.mxu0 %v1129
    %1173 = vmatprep.subr.mxu0 0.0
    %1174 = vmatpush1.msra.mxu0 %v1128
    %1175 = vmatprep.subr.mxu0 0.0
    %1176 = vmatpush1.msra.mxu0 %v1127
    %1177 = vmatprep.subr.mxu0 0.0
    %1178 = vmatpush1.msra.mxu0 %v1126
    %1179 = vmatprep.subr.mxu0 0.0
    %1180 = vmatpush2.msra.mxu0 0.0
    %1181 = vmatprep.subr.mxu0 0.0
    %1182 = vmatpush2.msra.mxu0 0.0
    %1183 = vmatprep.subr.mxu0 0.0
    %1184 = vmatpush2.msra.mxu0 0.0
    %1185 = vmatprep.subr.mxu0 0.0
    %1186 = vmatpush2.msra.mxu0 0.0
    %1187 = vmatprep.subr.mxu0 0.0
    %1188 = vmatpush2.msra.mxu0 0.0
    %1189 = vmatprep.subr.mxu0 0.0
    %1190 = vmatpush2.msra.mxu0 0.0
    %1191 = vmatprep.subr.mxu0 0.0
    %1192 = vmatpush2.msra.mxu0 0.0
    %1193 = vmatprep.subr.mxu0 0.0
    %1194 = vmatpush2.msra.mxu0 0.0
    %1195 = vmatprep.subr.mxu0 0.0
    %1196 = vmatpush2.msra.mxu0 0.0
    %1197 = vmatprep.subr.mxu0 0.0
    %1198 = vmatpush2.msra.mxu0 0.0
    %1199 = vmatprep.subr.mxu0 0.0
    %1200 = vmatpush2.msra.mxu0 0.0
    %1201 = vmatprep.subr.mxu0 0.0
    %1202 = vmatpush2.msra.mxu0 0.0
    %1203 = vmatprep.subr.mxu0 0.0
    %1204 = vmatpush2.msra.mxu0 0.0
    %1205 = vmatprep.subr.mxu0 0.0
    %1206 = vmatpush2.msra.mxu0 0.0
    %1207 = vmatprep.subr.mxu0 0.0
    %1208 = vmatpush2.msra.mxu0 0.0
    %1209 = vmatprep.subr.mxu0 0.0
    %1210 = vmatpush2.msra.mxu0 0.0
    %1211 = vmatprep.mubr.f32.mxu0 0.0
    %1212 = vmatmul.mubr.f32.gmra.mxu0 %v1145
    %v1213 = vpop.f32.mrf.mxu0
    %v1214 = vadd.f32 %v1139, %v1213
    %v1215 = vpop.f32.mrf.mxu0
    %1216 = vdwg.mxu0
    %vm1217 = vcmask 60416
    %1218 = vst.msk [vmem:[#allocation5] sm:$0xf] %vm1217, %v1214
    // Predicated region
    $region30: #{tpu_custom_call.1} parent=1 // pred_check
      _
    $region31: #{tpu_custom_call.1} parent=1 // pred_check_branch
      %1220 = sbr.rel (0) target = $region33
    $region32: #{tpu_custom_call.1} parent=1 // pred_region
      %s1222 = ssub.s32 64, 64
      %1223 = vsyncadd [#allocation4], %s1222
      %s1225 = sshll.u32 [#allocation5], 4
      %s1226 = int_to_ptr.vmem [resolvable:$true] %s1225
      %1228 = dma.vmem_to_hbm [thread:$0]  %s1226, 64, %s6, [#allocation4]
    $region33: #{tpu_custom_call.1} parent=1 // pred_fallthru
      _
    // Predicated region
    $region34: #{tpu_custom_call.1} parent=1 // pred_check
      _
    $region35: #{tpu_custom_call.1} parent=1 // pred_check_branch
      %1230 = sbr.rel (0) target = $region37
    $region36: #{tpu_custom_call.1} parent=1 // pred_region
      %1231 = dma.done [#allocation4], 64
    $region37: #{tpu_custom_call.1} parent=1 // pred_fallthru
      _
    %1232 = vsyncpa [#allocation3], 1
    %1233 = vsyncpa [#allocation4], 1

</llo_original>
